<compile_context>
chip_gen: v7x
topology: tpu7x:2x2x1
jax: 0.10.0
libtpu: 0.0.40
codegen_flags: <defaults>
</compile_context>

<pallas_src>
import functools

import jax
import jax.numpy as jnp
from jax.experimental import pallas as pl
from jax.experimental.pallas import tpu as pltpu

NEG_SLOPE = 0.2
LANE = 128


def _leaky_relu(x, slope=NEG_SLOPE):
    return jnp.where(x > 0, x, slope * x)


def _round_up(n, m):
    return ((n + m - 1) // m) * m


def mlp_kernel(x_ref, w1_ref, b1_ref, w2_ref, b2_ref, w3_ref, b3_ref, o_ref,
               *, inv_hw):
    # x_ref: (TB, HW, C).  AdaptiveAvgPool2d((1,1)) + squeeze == mean over HW.
    x = x_ref[...].astype(jnp.float32)
    # Sublane-axis reduction (XLU) + one VPU scale by the Python-constant 1/HW.
    pooled = jnp.sum(x, axis=1) * inv_hw                                  # (TB, C)

    # Linear(512 -> 256) + LeakyReLU(0.2)
    h1 = jnp.dot(pooled, w1_ref[...], preferred_element_type=jnp.float32) + b1_ref[...]
    h1 = _leaky_relu(h1)
    # Linear(256 -> 128) + LeakyReLU(0.2)
    h2 = jnp.dot(h1, w2_ref[...], preferred_element_type=jnp.float32) + b2_ref[...]
    h2 = _leaky_relu(h2)
    # Linear(128 -> num_classes), padded to 128 lanes -> unmasked vst.
    y = jnp.dot(h2, w3_ref[...], preferred_element_type=jnp.float32) + b3_ref[...]
    o_ref[...] = y.astype(o_ref.dtype)                                    # (TB, 128)


def _pick_batch_tile(B):
    """MXU-row-matched batch tile: 128 (v5e) / 256 (v6e, v7x); >=8 for tiny B."""
    if B < 128:
        return _round_up(max(B, 1), 8)
    if B < 256:
        return 128
    try:
        kind = jax.devices()[0].device_kind.lower()
    except Exception:
        kind = ""
    return 128 if "v5" in kind else 256


def classification_model(x_nchw, params, *, x_dtype=jnp.bfloat16):
    """x_nchw: (B, C, H, W). Returns (B, num_classes) float32."""
    B, C, H, W = x_nchw.shape
    HW = H * W
    w1, b1, w2, b2, w3, b3 = params
    h1_dim = w1.shape[1]
    h2_dim = w2.shape[1]
    num_classes = w3.shape[1]
    nc_pad = _round_up(num_classes, LANE)

    # NCHW -> (B, HW, C): channels on the lane axis (lane-dense loads; pooled
    # (TB, C) result is already in the layout the first matmul wants).
    x = jnp.transpose(x_nchw, (0, 2, 3, 1)).reshape(B, HW, C)
    # Stream the large activation tensor as bf16 (halves HBM traffic); the pool
    # sum and all matmul accumulation stay in f32 inside the kernel.
    x = x.astype(x_dtype)

    # Batch tile + zero-pad batch so the grid divides exactly.
    TB = _pick_batch_tile(B)
    B_pad = _round_up(B, TB)
    if B_pad != B:
        x = jnp.pad(x, ((0, B_pad - B), (0, 0), (0, 0)))

    # Pad the classifier head to 128 lanes (lane-dense MXU tail + stores).
    w3p = jnp.pad(w3, ((0, 0), (0, nc_pad - num_classes)))
    b3p = jnp.pad(b3, ((0, 0), (0, nc_pad - num_classes)))

    grid = (B_pad // TB,)

    # VMEM budget: double-buffered x/out tiles + resident weights + headroom.
    itemsize = jnp.dtype(x_dtype).itemsize
    x_tile_bytes = TB * HW * C * itemsize
    o_tile_bytes = TB * nc_pad * 4
    w_bytes = 4 * (C * h1_dim + h1_dim + h1_dim * h2_dim + h2_dim
                   + h2_dim * nc_pad + nc_pad)
    vmem_limit = int(2 * (x_tile_bytes + o_tile_bytes) + 2 * w_bytes + (4 << 20))
    vmem_limit = min(max(vmem_limit, 16 << 20), 64 << 20)

    kernel = functools.partial(mlp_kernel, inv_hw=1.0 / float(HW))

    out = pl.pallas_call(
        kernel,
        out_shape=jax.ShapeDtypeStruct((B_pad, nc_pad), jnp.float32),
        grid=grid,
        in_specs=[
            # Streamed, double-buffered activation tiles.
            pl.BlockSpec((TB, HW, C), lambda i: (i, 0, 0)),
            # Weights/biases: constant block index -> VMEM-resident across steps.
            pl.BlockSpec((C, h1_dim), lambda i: (0, 0)),
            pl.BlockSpec((1, h1_dim), lambda i: (0, 0)),
            pl.BlockSpec((h1_dim, h2_dim), lambda i: (0, 0)),
            pl.BlockSpec((1, h2_dim), lambda i: (0, 0)),
            pl.BlockSpec((h2_dim, nc_pad), lambda i: (0, 0)),
            pl.BlockSpec((1, nc_pad), lambda i: (0, 0)),
        ],
        out_specs=pl.BlockSpec((TB, nc_pad), lambda i: (i, 0)),
        compiler_params=pltpu.CompilerParams(
            dimension_semantics=("parallel",),   # shard batch grid across TCs (v7x)
            vmem_limit_bytes=vmem_limit,
        ),
    )(x, w1, b1, w2, b2, w3p, b3p)

    return out[:B, :num_classes]


def init_params(key, input_size=512, num_classes=7):
    # Weights stored as (in, out) so the kernel does pooled @ W + b
    # (equivalent to PyTorch's x @ W.T + b with W of shape (out, in)).
    k1, k2, k3, k4, k5, k6 = jax.random.split(key, 6)
    w1 = jax.random.normal(k1, (input_size, 256), jnp.float32) * 0.02
    b1 = jax.random.normal(k2, (1, 256), jnp.float32) * 0.01
    w2 = jax.random.normal(k3, (256, 128), jnp.float32) * 0.02
    b2 = jax.random.normal(k4, (1, 128), jnp.float32) * 0.01
    w3 = jax.random.normal(k5, (128, num_classes), jnp.float32) * 0.02
    b3 = jax.random.normal(k6, (1, num_classes), jnp.float32) * 0.01
    return (w1, b1, w2, b2, w3, b3)


def reference(x_nchw, params):
    w1, b1, w2, b2, w3, b3 = params
    pooled = jnp.mean(x_nchw, axis=(2, 3))
    h1 = _leaky_relu(pooled @ w1 + b1)
    h2 = _leaky_relu(h1 @ w2 + b2)
    return h2 @ w3 + b3


if __name__ == "__main__":
    key = jax.random.PRNGKey(0)
    kx, kp = jax.random.split(key)

    B, C, H, W = 2, 512, 8, 8            # C must equal input_size=512
    x = jax.random.normal(kx, (B, C, H, W), jnp.float32)
    params = init_params(kp, input_size=C, num_classes=7)

    y_ref = reference(x, params)

    # Exact-precision path (f32 x): must match the reference tightly.
    y_f32 = classification_model(x, params, x_dtype=jnp.float32)
    jax.block_until_ready(y_f32)
    assert y_f32.shape == (B, 7)
    assert jnp.allclose(y_f32, y_ref, atol=1e-4, rtol=1e-4)

    # Default path: bf16-streamed x (halved HBM traffic), f32 accumulation.
    y = classification_model(x, params)
    jax.block_until_ready(y)
    assert y.shape == (B, 7)
    assert jnp.allclose(y, y_ref, atol=2e-3, rtol=2e-2)

    print("KERNEL_OK")
</pallas_src>

<mosaic_0001>
module attributes {stable_mosaic.version = 11 : i64} {
  func.func @mlp_kernel(%arg0: i32, %arg1: memref<8x64x512xf32, #tpu.memory_space<vmem>>, %arg2: memref<512x256xf32, #tpu.memory_space<vmem>>, %arg3: memref<1x256xf32, #tpu.memory_space<vmem>>, %arg4: memref<256x128xf32, #tpu.memory_space<vmem>>, %arg5: memref<1x128xf32, #tpu.memory_space<vmem>>, %arg6: memref<128x128xf32, #tpu.memory_space<vmem>>, %arg7: memref<1x128xf32, #tpu.memory_space<vmem>>, %arg8: memref<8x128xf32, #tpu.memory_space<vmem>>) attributes {dimension_semantics = [#tpu.dimension_semantics<parallel>], iteration_bounds = array<i64: 1>, scalar_prefetch = 0 : i64, scratch_operands = 0 : i64, tpu.core_type = #tpu.core_type<tc>, window_params = [{transform_indices = @transform_0, window_bounds = array<i64: 8, 64, 512>}, {pipeline_mode = #tpu.pipeline_mode<synchronous>, transform_indices = @transform_1, window_bounds = array<i64: 512, 256>}, {pipeline_mode = #tpu.pipeline_mode<synchronous>, transform_indices = @transform_2, window_bounds = array<i64: 1, 256>}, {pipeline_mode = #tpu.pipeline_mode<synchronous>, transform_indices = @transform_3, window_bounds = array<i64: 256, 128>}, {pipeline_mode = #tpu.pipeline_mode<synchronous>, transform_indices = @transform_4, window_bounds = array<i64: 1, 128>}, {pipeline_mode = #tpu.pipeline_mode<synchronous>, transform_indices = @transform_5, window_bounds = array<i64: 128, 128>}, {pipeline_mode = #tpu.pipeline_mode<synchronous>, transform_indices = @transform_6, window_bounds = array<i64: 1, 128>}, {transform_indices = @transform_7, window_bounds = array<i64: 8, 128>}]} {
    %c0 = arith.constant 0 : index
    %c0_0 = arith.constant 0 : index
    %c0_1 = arith.constant 0 : index
    %0 = vector.load %arg1[%c0, %c0_0, %c0_1] : memref<8x64x512xf32, #tpu.memory_space<vmem>>, vector<8x64x512xf32>
    %cst = arith.constant dense<0.000000e+00> : vector<8x512xf32>
    %1 = vector.multi_reduction <add>, %0, %cst [1] : vector<8x64x512xf32> to vector<8x512xf32>
    %cst_2 = arith.constant 1.562500e-02 : f32
    %2 = vector.broadcast %cst_2 : f32 to vector<8x512xf32>
    %3 = arith.mulf %1, %2 : vector<8x512xf32>
    %c0_3 = arith.constant 0 : index
    %c0_4 = arith.constant 0 : index
    %4 = vector.load %arg2[%c0_3, %c0_4] : memref<512x256xf32, #tpu.memory_space<vmem>>, vector<512x256xf32>
    %cst_5 = arith.constant dense<0.000000e+00> : vector<8x256xf32>
    %5 = tpu.matmul %3, %4, %cst_5 {dimension_numbers = #tpu.dot_dimension_numbers<[1], [0], [0], [1], [0, 0, 1, 1], [], []>} : vector<8x512xf32>, vector<512x256xf32>, vector<8x256xf32> -> vector<8x256xf32>
    %c0_6 = arith.constant 0 : index
    %c0_7 = arith.constant 0 : index
    %6 = vector.load %arg3[%c0_6, %c0_7] : memref<1x256xf32, #tpu.memory_space<vmem>>, vector<1x256xf32>
    %7 = vector.broadcast %6 : vector<1x256xf32> to vector<8x256xf32>
    %8 = arith.addf %5, %7 : vector<8x256xf32>
    %cst_8 = arith.constant 0.000000e+00 : f32
    %9 = vector.broadcast %cst_8 : f32 to vector<8x256xf32>
    %10 = arith.cmpf ogt, %8, %9 : vector<8x256xf32>
    %cst_9 = arith.constant 2.000000e-01 : f32
    %11 = vector.broadcast %cst_9 : f32 to vector<8x256xf32>
    %12 = arith.mulf %11, %8 : vector<8x256xf32>
    %13 = arith.select %10, %8, %12 : vector<8x256xi1>, vector<8x256xf32>
    %c0_10 = arith.constant 0 : index
    %c0_11 = arith.constant 0 : index
    %14 = vector.load %arg4[%c0_10, %c0_11] : memref<256x128xf32, #tpu.memory_space<vmem>>, vector<256x128xf32>
    %cst_12 = arith.constant dense<0.000000e+00> : vector<8x128xf32>
    %15 = tpu.matmul %13, %14, %cst_12 {dimension_numbers = #tpu.dot_dimension_numbers<[1], [0], [0], [1], [0, 0, 1, 1], [], []>} : vector<8x256xf32>, vector<256x128xf32>, vector<8x128xf32> -> vector<8x128xf32>
    %c0_13 = arith.constant 0 : index
    %c0_14 = arith.constant 0 : index
    %16 = vector.load %arg5[%c0_13, %c0_14] : memref<1x128xf32, #tpu.memory_space<vmem>>, vector<1x128xf32>
    %17 = vector.broadcast %16 : vector<1x128xf32> to vector<8x128xf32>
    %18 = arith.addf %15, %17 : vector<8x128xf32>
    %cst_15 = arith.constant 0.000000e+00 : f32
    %19 = vector.broadcast %cst_15 : f32 to vector<8x128xf32>
    %20 = arith.cmpf ogt, %18, %19 : vector<8x128xf32>
    %cst_16 = arith.constant 2.000000e-01 : f32
    %21 = vector.broadcast %cst_16 : f32 to vector<8x128xf32>
    %22 = arith.mulf %21, %18 : vector<8x128xf32>
    %23 = arith.select %20, %18, %22 : vector<8x128xi1>, vector<8x128xf32>
    %c0_17 = arith.constant 0 : index
    %c0_18 = arith.constant 0 : index
    %24 = vector.load %arg6[%c0_17, %c0_18] : memref<128x128xf32, #tpu.memory_space<vmem>>, vector<128x128xf32>
    %cst_19 = arith.constant dense<0.000000e+00> : vector<8x128xf32>
    %25 = tpu.matmul %23, %24, %cst_19 {dimension_numbers = #tpu.dot_dimension_numbers<[1], [0], [0], [1], [0, 0, 1, 1], [], []>} : vector<8x128xf32>, vector<128x128xf32>, vector<8x128xf32> -> vector<8x128xf32>
    %c0_20 = arith.constant 0 : index
    %c0_21 = arith.constant 0 : index
    %26 = vector.load %arg7[%c0_20, %c0_21] : memref<1x128xf32, #tpu.memory_space<vmem>>, vector<1x128xf32>
    %27 = vector.broadcast %26 : vector<1x128xf32> to vector<8x128xf32>
    %28 = arith.addf %25, %27 : vector<8x128xf32>
    %c0_22 = arith.constant 0 : index
    %c0_23 = arith.constant 0 : index
    %29 = vector.load %arg8[%c0_22, %c0_23] : memref<8x128xf32, #tpu.memory_space<vmem>>, vector<8x128xf32>
    tpu.vector_store %arg8[%c0_22, %c0_23], %28 {strides = array<i32>} : memref<8x128xf32, #tpu.memory_space<vmem>>, vector<8x128xf32>,
    return
  }
  func.func @transform_0(%arg0: i32) -> (i32, i32, i32) {
    %c0_i32 = arith.constant 0 : i32
    %c0_i32_0 = arith.constant 0 : i32
    %c0_i32_1 = arith.constant 0 : i32
    return %arg0, %c0_i32, %c0_i32_0 : i32, i32, i32
  }
  func.func @transform_1(%arg0: i32) -> (i32, i32) {
    %c0_i32 = arith.constant 0 : i32
    %c0_i32_0 = arith.constant 0 : i32
    %c0_i32_1 = arith.constant 0 : i32
    return %c0_i32, %c0_i32_0 : i32, i32
  }
  func.func @transform_2(%arg0: i32) -> (i32, i32) {
    %c0_i32 = arith.constant 0 : i32
    %c0_i32_0 = arith.constant 0 : i32
    %c0_i32_1 = arith.constant 0 : i32
    return %c0_i32, %c0_i32_0 : i32, i32
  }
  func.func @transform_3(%arg0: i32) -> (i32, i32) {
    %c0_i32 = arith.constant 0 : i32
    %c0_i32_0 = arith.constant 0 : i32
    %c0_i32_1 = arith.constant 0 : i32
    return %c0_i32, %c0_i32_0 : i32, i32
  }
  func.func @transform_4(%arg0: i32) -> (i32, i32) {
    %c0_i32 = arith.constant 0 : i32
    %c0_i32_0 = arith.constant 0 : i32
    %c0_i32_1 = arith.constant 0 : i32
    return %c0_i32, %c0_i32_0 : i32, i32
  }
  func.func @transform_5(%arg0: i32) -> (i32, i32) {
    %c0_i32 = arith.constant 0 : i32
    %c0_i32_0 = arith.constant 0 : i32
    %c0_i32_1 = arith.constant 0 : i32
    return %c0_i32, %c0_i32_0 : i32, i32
  }
  func.func @transform_6(%arg0: i32) -> (i32, i32) {
    %c0_i32 = arith.constant 0 : i32
    %c0_i32_0 = arith.constant 0 : i32
    %c0_i32_1 = arith.constant 0 : i32
    return %c0_i32, %c0_i32_0 : i32, i32
  }
  func.func @transform_7(%arg0: i32) -> (i32, i32) {
    %c0_i32 = arith.constant 0 : i32
    %c0_i32_0 = arith.constant 0 : i32
    return %arg0, %c0_i32 : i32, i32
  }
}

</mosaic_0001>

<llo_original>
// kernel: tpu_custom_call.1
$region0: #{tpu_custom_call.1}
  #allocation0 [shape = 'u32[]', space=smem, size = 0x4, offset = 0x4, fixed_abs, tag = 'smem constant byte address 0x4 - core index']
  #allocation1 [shape = 'u32[144,128]{1,0:T(1,128)}', space=vmem, size = 0x12000, scoped, tag = 'internal scratch']
  %s0 = inlined_call_operand.hbm [shape: f32[8,64,512], index: 0, kind: input, shape index: {}]
  %s1 = inlined_call_operand.hbm [shape: f32[512,256], index: 1, kind: input, shape index: {}]
  %s2 = inlined_call_operand.vmem [shape: f32[1,256], index: 2, kind: input, shape index: {}]
  %s3 = inlined_call_operand.hbm [shape: f32[256,128], index: 3, kind: input, shape index: {}]
  %s4 = inlined_call_operand.vmem [shape: f32[1,128], index: 4, kind: input, shape index: {}]
  %s5 = inlined_call_operand.hbm [shape: f32[128,128], index: 5, kind: input, shape index: {}]
  %s6 = inlined_call_operand.vmem [shape: f32[1,128], index: 6, kind: input, shape index: {}]
  %s7 = inlined_call_operand.hbm [shape: f32[8,128], index: 7, kind: output, shape index: {}]
  %s8 = sld [smem:[#allocation0]]
  $region54: #{tpu_custom_call.1} parent=0
    _
  %s10 = ssub.s32 1, %s8
  %s11 = scalar_select 0, %s10, %s8
  $region1: #{tpu_custom_call.1} parent=0
    #allocation2 [shape = 'u8[1048576]{0}', space=vmem, size = 0x100000, scoped, tag = 'input window, operand 0, single buffered']
    #allocation3 [shape = 's32[1]{0}', space=sflag, size = 0x4, scoped, tag = 'scoped memory for tpu_custom_call.1']
    #allocation4 [shape = 's32[1]{0}', space=sflag, size = 0x4, scoped, tag = 'scoped memory for tpu_custom_call.1']
    #allocation5 [shape = 'u8[524288]{0}', space=vmem, size = 0x80000, scoped, tag = 'input window, operand 1, single buffered']
    #allocation6 [shape = 's32[1]{0}', space=sflag, size = 0x4, scoped, tag = 'scoped memory for tpu_custom_call.1']
    #allocation7 [shape = 'u8[131072]{0}', space=vmem, size = 0x20000, scoped, tag = 'input window, operand 3, single buffered']
    #allocation8 [shape = 'u8[65536]{0}', space=vmem, size = 0x10000, scoped, tag = 'input window, operand 5, single buffered']
    #allocation9 [shape = 's32[1]{0}', space=sflag, size = 0x4, scoped, tag = 'scoped memory for tpu_custom_call.1']
    #allocation10 [shape = 'u8[4096]{0}', space=vmem, size = 0x1000, scoped, tag = 'output window, operand 0, single buffered']
    %12 = vsyncpa [#allocation3], 0
    %13 = vsyncpa [#allocation6], 0
    %14 = vsyncpa [#allocation9], 0
    %15 = vsyncpa [#allocation4], 0
    // Predicated region
    $region2: #{tpu_custom_call.1} parent=1 // pred_check
      _
    $region3: #{tpu_custom_call.1} parent=1 // pred_check_branch
      %17 = sbr.rel (0) target = $region5
    $region4: #{tpu_custom_call.1} parent=1 // pred_region
      %s19 = ssub.s32 32768, 32768
      %20 = vsyncadd [#allocation3], %s19
      %s21 = sshll.u32 [#allocation2], 4
      %s22 = int_to_ptr.vmem [resolvable:$true] %s21
      %27 = dma.hbm_to_vmem [thread:$0]  %s0, 32768, %s22, [#allocation3], 512, 512, 32
    $region5: #{tpu_custom_call.1} parent=1 // pred_fallthru
      _
    // Predicated region
    $region6: #{tpu_custom_call.1} parent=1 // pred_check
      _
    $region7: #{tpu_custom_call.1} parent=1 // pred_check_branch
      %29 = sbr.rel (0) target = $region9
    $region8: #{tpu_custom_call.1} parent=1 // pred_region
      %s31 = ssub.s32 16384, 16384
      %32 = vsyncadd [#allocation6], %s31
      %s33 = sshll.u32 [#allocation5], 4
      %s34 = int_to_ptr.vmem [resolvable:$true] %s33
      %39 = dma.hbm_to_vmem [thread:$0]  %s1, 16384, %s34, [#allocation6], 256, 256, 16
    $region9: #{tpu_custom_call.1} parent=1 // pred_fallthru
      _
    // Predicated region
    $region10: #{tpu_custom_call.1} parent=1 // pred_check
      _
    $region11: #{tpu_custom_call.1} parent=1 // pred_check_branch
      %41 = sbr.rel (0) target = $region13
    $region12: #{tpu_custom_call.1} parent=1 // pred_region
      _
    $region13: #{tpu_custom_call.1} parent=1 // pred_fallthru
      _
    // Predicated region
    $region14: #{tpu_custom_call.1} parent=1 // pred_check
      _
    $region15: #{tpu_custom_call.1} parent=1 // pred_check_branch
      %43 = sbr.rel (0) target = $region17
    $region16: #{tpu_custom_call.1} parent=1 // pred_region
      %s45 = ssub.s32 4096, 4096
      %46 = vsyncadd [#allocation6], %s45
      %s47 = sshll.u32 [#allocation7], 4
      %s48 = int_to_ptr.vmem [resolvable:$true] %s47
      %53 = dma.hbm_to_vmem [thread:$0]  %s3, 4096, %s48, [#allocation6], 128, 128, 8
    $region17: #{tpu_custom_call.1} parent=1 // pred_fallthru
      _
    // Predicated region
    $region18: #{tpu_custom_call.1} parent=1 // pred_check
      _
    $region19: #{tpu_custom_call.1} parent=1 // pred_check_branch
      %55 = sbr.rel (0) target = $region21
    $region20: #{tpu_custom_call.1} parent=1 // pred_region
      _
    $region21: #{tpu_custom_call.1} parent=1 // pred_fallthru
      _
    // Predicated region
    $region22: #{tpu_custom_call.1} parent=1 // pred_check
      _
    $region23: #{tpu_custom_call.1} parent=1 // pred_check_branch
      %57 = sbr.rel (0) target = $region25
    $region24: #{tpu_custom_call.1} parent=1 // pred_region
      %s59 = ssub.s32 2048, 2048
      %60 = vsyncadd [#allocation9], %s59
      %s61 = sshll.u32 [#allocation8], 4
      %s62 = int_to_ptr.vmem [resolvable:$true] %s61
      %67 = dma.hbm_to_vmem [thread:$0]  %s5, 2048, %s62, [#allocation9], 128, 128, 8
    $region25: #{tpu_custom_call.1} parent=1 // pred_fallthru
      _
    // Predicated region
    $region26: #{tpu_custom_call.1} parent=1 // pred_check
      _
    $region27: #{tpu_custom_call.1} parent=1 // pred_check_branch
      %69 = sbr.rel (0) target = $region29
    $region28: #{tpu_custom_call.1} parent=1 // pred_region
      _
    $region29: #{tpu_custom_call.1} parent=1 // pred_fallthru
      _
    // Predicated region
    $region30: #{tpu_custom_call.1} parent=1 // pred_check
      _
    $region31: #{tpu_custom_call.1} parent=1 // pred_check_branch
      %71 = sbr.rel (0) target = $region33
    $region32: #{tpu_custom_call.1} parent=1 // pred_region
      %72 = dma.done [#allocation3], 32768
    $region33: #{tpu_custom_call.1} parent=1 // pred_fallthru
      _
    // Predicated region
    $region34: #{tpu_custom_call.1} parent=1 // pred_check
      _
    $region35: #{tpu_custom_call.1} parent=1 // pred_check_branch
      %74 = sbr.rel (0) target = $region37
    $region36: #{tpu_custom_call.1} parent=1 // pred_region
      %75 = dma.done [#allocation6], 16384
    $region37: #{tpu_custom_call.1} parent=1 // pred_fallthru
      _
    // Predicated region
    $region38: #{tpu_custom_call.1} parent=1 // pred_check
      _
    $region39: #{tpu_custom_call.1} parent=1 // pred_check_branch
      %77 = sbr.rel (0) target = $region41
    $region40: #{tpu_custom_call.1} parent=1 // pred_region
      %78 = dma.done [#allocation6], 4096
    $region41: #{tpu_custom_call.1} parent=1 // pred_fallthru
      _
    // Predicated region
    $region42: #{tpu_custom_call.1} parent=1 // pred_check
      _
    $region43: #{tpu_custom_call.1} parent=1 // pred_check_branch
      %80 = sbr.rel (0) target = $region45
    $region44: #{tpu_custom_call.1} parent=1 // pred_region
      %81 = dma.done [#allocation9], 2048
    $region45: #{tpu_custom_call.1} parent=1 // pred_fallthru
      _
    %v82 = vld [vmem:[#allocation2] sm:$0xff]
    %v83 = vld [vmem:[#allocation2 + $0x8] sm:$0xff]
    %v84 = vld [vmem:[#allocation2 + $0x10] sm:$0xff]
    %v85 = vld [vmem:[#allocation2 + $0x18] sm:$0xff]
    %v86 = vld [vmem:[#allocation2 + $0x20] sm:$0xff]
    %v87 = vld [vmem:[#allocation2 + $0x28] sm:$0xff]
    %v88 = vld [vmem:[#allocation2 + $0x30] sm:$0xff]
    %v89 = vld [vmem:[#allocation2 + $0x38] sm:$0xff]
    %v90 = vld [vmem:[#allocation2 + $0x40] sm:$0xff]
    %v91 = vld [vmem:[#allocation2 + $0x48] sm:$0xff]
    %v92 = vld [vmem:[#allocation2 + $0x50] sm:$0xff]
    %v93 = vld [vmem:[#allocation2 + $0x58] sm:$0xff]
    %v94 = vld [vmem:[#allocation2 + $0x60] sm:$0xff]
    %v95 = vld [vmem:[#allocation2 + $0x68] sm:$0xff]
    %v96 = vld [vmem:[#allocation2 + $0x70] sm:$0xff]
    %v97 = vld [vmem:[#allocation2 + $0x78] sm:$0xff]
    %v98 = vld [vmem:[#allocation2 + $0x80] sm:$0xff]
    %v99 = vld [vmem:[#allocation2 + $0x88] sm:$0xff]
    %v100 = vld [vmem:[#allocation2 + $0x90] sm:$0xff]
    %v101 = vld [vmem:[#allocation2 + $0x98] sm:$0xff]
    %v102 = vld [vmem:[#allocation2 + $0xa0] sm:$0xff]
    %v103 = vld [vmem:[#allocation2 + $0xa8] sm:$0xff]
    %v104 = vld [vmem:[#allocation2 + $0xb0] sm:$0xff]
    %v105 = vld [vmem:[#allocation2 + $0xb8] sm:$0xff]
    %v106 = vld [vmem:[#allocation2 + $0xc0] sm:$0xff]
    %v107 = vld [vmem:[#allocation2 + $0xc8] sm:$0xff]
    %v108 = vld [vmem:[#allocation2 + $0xd0] sm:$0xff]
    %v109 = vld [vmem:[#allocation2 + $0xd8] sm:$0xff]
    %v110 = vld [vmem:[#allocation2 + $0xe0] sm:$0xff]
    %v111 = vld [vmem:[#allocation2 + $0xe8] sm:$0xff]
    %v112 = vld [vmem:[#allocation2 + $0xf0] sm:$0xff]
    %v113 = vld [vmem:[#allocation2 + $0xf8] sm:$0xff]
    %v114 = vld [vmem:[#allocation2 + $0x100] sm:$0xff]
    %v115 = vld [vmem:[#allocation2 + $0x108] sm:$0xff]
    %v116 = vld [vmem:[#allocation2 + $0x110] sm:$0xff]
    %v117 = vld [vmem:[#allocation2 + $0x118] sm:$0xff]
    %v118 = vld [vmem:[#allocation2 + $0x120] sm:$0xff]
    %v119 = vld [vmem:[#allocation2 + $0x128] sm:$0xff]
    %v120 = vld [vmem:[#allocation2 + $0x130] sm:$0xff]
    %v121 = vld [vmem:[#allocation2 + $0x138] sm:$0xff]
    %v122 = vld [vmem:[#allocation2 + $0x140] sm:$0xff]
    %v123 = vld [vmem:[#allocation2 + $0x148] sm:$0xff]
    %v124 = vld [vmem:[#allocation2 + $0x150] sm:$0xff]
    %v125 = vld [vmem:[#allocation2 + $0x158] sm:$0xff]
    %v126 = vld [vmem:[#allocation2 + $0x160] sm:$0xff]
    %v127 = vld [vmem:[#allocation2 + $0x168] sm:$0xff]
    %v128 = vld [vmem:[#allocation2 + $0x170] sm:$0xff]
    %v129 = vld [vmem:[#allocation2 + $0x178] sm:$0xff]
    %v130 = vld [vmem:[#allocation2 + $0x180] sm:$0xff]
    %v131 = vld [vmem:[#allocation2 + $0x188] sm:$0xff]
    %v132 = vld [vmem:[#allocation2 + $0x190] sm:$0xff]
    %v133 = vld [vmem:[#allocation2 + $0x198] sm:$0xff]
    %v134 = vld [vmem:[#allocation2 + $0x1a0] sm:$0xff]
    %v135 = vld [vmem:[#allocation2 + $0x1a8] sm:$0xff]
    %v136 = vld [vmem:[#allocation2 + $0x1b0] sm:$0xff]
    %v137 = vld [vmem:[#allocation2 + $0x1b8] sm:$0xff]
    %v138 = vld [vmem:[#allocation2 + $0x1c0] sm:$0xff]
    %v139 = vld [vmem:[#allocation2 + $0x1c8] sm:$0xff]
    %v140 = vld [vmem:[#allocation2 + $0x1d0] sm:$0xff]
    %v141 = vld [vmem:[#allocation2 + $0x1d8] sm:$0xff]
    %v142 = vld [vmem:[#allocation2 + $0x1e0] sm:$0xff]
    %v143 = vld [vmem:[#allocation2 + $0x1e8] sm:$0xff]
    %v144 = vld [vmem:[#allocation2 + $0x1f0] sm:$0xff]
    %v145 = vld [vmem:[#allocation2 + $0x1f8] sm:$0xff]
    %v146 = vld [vmem:[#allocation2 + $0x200] sm:$0xff]
    %v147 = vld [vmem:[#allocation2 + $0x208] sm:$0xff]
    %v148 = vld [vmem:[#allocation2 + $0x210] sm:$0xff]
    %v149 = vld [vmem:[#allocation2 + $0x218] sm:$0xff]
    %v150 = vld [vmem:[#allocation2 + $0x220] sm:$0xff]
    %v151 = vld [vmem:[#allocation2 + $0x228] sm:$0xff]
    %v152 = vld [vmem:[#allocation2 + $0x230] sm:$0xff]
    %v153 = vld [vmem:[#allocation2 + $0x238] sm:$0xff]
    %v154 = vld [vmem:[#allocation2 + $0x240] sm:$0xff]
    %v155 = vld [vmem:[#allocation2 + $0x248] sm:$0xff]
    %v156 = vld [vmem:[#allocation2 + $0x250] sm:$0xff]
    %v157 = vld [vmem:[#allocation2 + $0x258] sm:$0xff]
    %v158 = vld [vmem:[#allocation2 + $0x260] sm:$0xff]
    %v159 = vld [vmem:[#allocation2 + $0x268] sm:$0xff]
    %v160 = vld [vmem:[#allocation2 + $0x270] sm:$0xff]
    %v161 = vld [vmem:[#allocation2 + $0x278] sm:$0xff]
    %v162 = vld [vmem:[#allocation2 + $0x280] sm:$0xff]
    %v163 = vld [vmem:[#allocation2 + $0x288] sm:$0xff]
    %v164 = vld [vmem:[#allocation2 + $0x290] sm:$0xff]
    %v165 = vld [vmem:[#allocation2 + $0x298] sm:$0xff]
    %v166 = vld [vmem:[#allocation2 + $0x2a0] sm:$0xff]
    %v167 = vld [vmem:[#allocation2 + $0x2a8] sm:$0xff]
    %v168 = vld [vmem:[#allocation2 + $0x2b0] sm:$0xff]
    %v169 = vld [vmem:[#allocation2 + $0x2b8] sm:$0xff]
    %v170 = vld [vmem:[#allocation2 + $0x2c0] sm:$0xff]
    %v171 = vld [vmem:[#allocation2 + $0x2c8] sm:$0xff]
    %v172 = vld [vmem:[#allocation2 + $0x2d0] sm:$0xff]
    %v173 = vld [vmem:[#allocation2 + $0x2d8] sm:$0xff]
    %v174 = vld [vmem:[#allocation2 + $0x2e0] sm:$0xff]
    %v175 = vld [vmem:[#allocation2 + $0x2e8] sm:$0xff]
    %v176 = vld [vmem:[#allocation2 + $0x2f0] sm:$0xff]
    %v177 = vld [vmem:[#allocation2 + $0x2f8] sm:$0xff]
    %v178 = vld [vmem:[#allocation2 + $0x300] sm:$0xff]
    %v179 = vld [vmem:[#allocation2 + $0x308] sm:$0xff]
    %v180 = vld [vmem:[#allocation2 + $0x310] sm:$0xff]
    %v181 = vld [vmem:[#allocation2 + $0x318] sm:$0xff]
    %v182 = vld [vmem:[#allocation2 + $0x320] sm:$0xff]
    %v183 = vld [vmem:[#allocation2 + $0x328] sm:$0xff]
    %v184 = vld [vmem:[#allocation2 + $0x330] sm:$0xff]
    %v185 = vld [vmem:[#allocation2 + $0x338] sm:$0xff]
    %v186 = vld [vmem:[#allocation2 + $0x340] sm:$0xff]
    %v187 = vld [vmem:[#allocation2 + $0x348] sm:$0xff]
    %v188 = vld [vmem:[#allocation2 + $0x350] sm:$0xff]
    %v189 = vld [vmem:[#allocation2 + $0x358] sm:$0xff]
    %v190 = vld [vmem:[#allocation2 + $0x360] sm:$0xff]
    %v191 = vld [vmem:[#allocation2 + $0x368] sm:$0xff]
    %v192 = vld [vmem:[#allocation2 + $0x370] sm:$0xff]
    %v193 = vld [vmem:[#allocation2 + $0x378] sm:$0xff]
    %v194 = vld [vmem:[#allocation2 + $0x380] sm:$0xff]
    %v195 = vld [vmem:[#allocation2 + $0x388] sm:$0xff]
    %v196 = vld [vmem:[#allocation2 + $0x390] sm:$0xff]
    %v197 = vld [vmem:[#allocation2 + $0x398] sm:$0xff]
    %v198 = vld [vmem:[#allocation2 + $0x3a0] sm:$0xff]
    %v199 = vld [vmem:[#allocation2 + $0x3a8] sm:$0xff]
    %v200 = vld [vmem:[#allocation2 + $0x3b0] sm:$0xff]
    %v201 = vld [vmem:[#allocation2 + $0x3b8] sm:$0xff]
    %v202 = vld [vmem:[#allocation2 + $0x3c0] sm:$0xff]
    %v203 = vld [vmem:[#allocation2 + $0x3c8] sm:$0xff]
    %v204 = vld [vmem:[#allocation2 + $0x3d0] sm:$0xff]
    %v205 = vld [vmem:[#allocation2 + $0x3d8] sm:$0xff]
    %v206 = vld [vmem:[#allocation2 + $0x3e0] sm:$0xff]
    %v207 = vld [vmem:[#allocation2 + $0x3e8] sm:$0xff]
    %v208 = vld [vmem:[#allocation2 + $0x3f0] sm:$0xff]
    %v209 = vld [vmem:[#allocation2 + $0x3f8] sm:$0xff]
    %v210 = vld [vmem:[#allocation2 + $0x400] sm:$0xff]
    %v211 = vld [vmem:[#allocation2 + $0x408] sm:$0xff]
    %v212 = vld [vmem:[#allocation2 + $0x410] sm:$0xff]
    %v213 = vld [vmem:[#allocation2 + $0x418] sm:$0xff]
    %v214 = vld [vmem:[#allocation2 + $0x420] sm:$0xff]
    %v215 = vld [vmem:[#allocation2 + $0x428] sm:$0xff]
    %v216 = vld [vmem:[#allocation2 + $0x430] sm:$0xff]
    %v217 = vld [vmem:[#allocation2 + $0x438] sm:$0xff]
    %v218 = vld [vmem:[#allocation2 + $0x440] sm:$0xff]
    %v219 = vld [vmem:[#allocation2 + $0x448] sm:$0xff]
    %v220 = vld [vmem:[#allocation2 + $0x450] sm:$0xff]
    %v221 = vld [vmem:[#allocation2 + $0x458] sm:$0xff]
    %v222 = vld [vmem:[#allocation2 + $0x460] sm:$0xff]
    %v223 = vld [vmem:[#allocation2 + $0x468] sm:$0xff]
    %v224 = vld [vmem:[#allocation2 + $0x470] sm:$0xff]
    %v225 = vld [vmem:[#allocation2 + $0x478] sm:$0xff]
    %v226 = vld [vmem:[#allocation2 + $0x480] sm:$0xff]
    %v227 = vld [vmem:[#allocation2 + $0x488] sm:$0xff]
    %v228 = vld [vmem:[#allocation2 + $0x490] sm:$0xff]
    %v229 = vld [vmem:[#allocation2 + $0x498] sm:$0xff]
    %v230 = vld [vmem:[#allocation2 + $0x4a0] sm:$0xff]
    %v231 = vld [vmem:[#allocation2 + $0x4a8] sm:$0xff]
    %v232 = vld [vmem:[#allocation2 + $0x4b0] sm:$0xff]
    %v233 = vld [vmem:[#allocation2 + $0x4b8] sm:$0xff]
    %v234 = vld [vmem:[#allocation2 + $0x4c0] sm:$0xff]
    %v235 = vld [vmem:[#allocation2 + $0x4c8] sm:$0xff]
    %v236 = vld [vmem:[#allocation2 + $0x4d0] sm:$0xff]
    %v237 = vld [vmem:[#allocation2 + $0x4d8] sm:$0xff]
    %v238 = vld [vmem:[#allocation2 + $0x4e0] sm:$0xff]
    %v239 = vld [vmem:[#allocation2 + $0x4e8] sm:$0xff]
    %v240 = vld [vmem:[#allocation2 + $0x4f0] sm:$0xff]
    %v241 = vld [vmem:[#allocation2 + $0x4f8] sm:$0xff]
    %v242 = vld [vmem:[#allocation2 + $0x500] sm:$0xff]
    %v243 = vld [vmem:[#allocation2 + $0x508] sm:$0xff]
    %v244 = vld [vmem:[#allocation2 + $0x510] sm:$0xff]
    %v245 = vld [vmem:[#allocation2 + $0x518] sm:$0xff]
    %v246 = vld [vmem:[#allocation2 + $0x520] sm:$0xff]
    %v247 = vld [vmem:[#allocation2 + $0x528] sm:$0xff]
    %v248 = vld [vmem:[#allocation2 + $0x530] sm:$0xff]
    %v249 = vld [vmem:[#allocation2 + $0x538] sm:$0xff]
    %v250 = vld [vmem:[#allocation2 + $0x540] sm:$0xff]
    %v251 = vld [vmem:[#allocation2 + $0x548] sm:$0xff]
    %v252 = vld [vmem:[#allocation2 + $0x550] sm:$0xff]
    %v253 = vld [vmem:[#allocation2 + $0x558] sm:$0xff]
    %v254 = vld [vmem:[#allocation2 + $0x560] sm:$0xff]
    %v255 = vld [vmem:[#allocation2 + $0x568] sm:$0xff]
    %v256 = vld [vmem:[#allocation2 + $0x570] sm:$0xff]
    %v257 = vld [vmem:[#allocation2 + $0x578] sm:$0xff]
    %v258 = vld [vmem:[#allocation2 + $0x580] sm:$0xff]
    %v259 = vld [vmem:[#allocation2 + $0x588] sm:$0xff]
    %v260 = vld [vmem:[#allocation2 + $0x590] sm:$0xff]
    %v261 = vld [vmem:[#allocation2 + $0x598] sm:$0xff]
    %v262 = vld [vmem:[#allocation2 + $0x5a0] sm:$0xff]
    %v263 = vld [vmem:[#allocation2 + $0x5a8] sm:$0xff]
    %v264 = vld [vmem:[#allocation2 + $0x5b0] sm:$0xff]
    %v265 = vld [vmem:[#allocation2 + $0x5b8] sm:$0xff]
    %v266 = vld [vmem:[#allocation2 + $0x5c0] sm:$0xff]
    %v267 = vld [vmem:[#allocation2 + $0x5c8] sm:$0xff]
    %v268 = vld [vmem:[#allocation2 + $0x5d0] sm:$0xff]
    %v269 = vld [vmem:[#allocation2 + $0x5d8] sm:$0xff]
    %v270 = vld [vmem:[#allocation2 + $0x5e0] sm:$0xff]
    %v271 = vld [vmem:[#allocation2 + $0x5e8] sm:$0xff]
    %v272 = vld [vmem:[#allocation2 + $0x5f0] sm:$0xff]
    %v273 = vld [vmem:[#allocation2 + $0x5f8] sm:$0xff]
    %v274 = vld [vmem:[#allocation2 + $0x600] sm:$0xff]
    %v275 = vld [vmem:[#allocation2 + $0x608] sm:$0xff]
    %v276 = vld [vmem:[#allocation2 + $0x610] sm:$0xff]
    %v277 = vld [vmem:[#allocation2 + $0x618] sm:$0xff]
    %v278 = vld [vmem:[#allocation2 + $0x620] sm:$0xff]
    %v279 = vld [vmem:[#allocation2 + $0x628] sm:$0xff]
    %v280 = vld [vmem:[#allocation2 + $0x630] sm:$0xff]
    %v281 = vld [vmem:[#allocation2 + $0x638] sm:$0xff]
    %v282 = vld [vmem:[#allocation2 + $0x640] sm:$0xff]
    %v283 = vld [vmem:[#allocation2 + $0x648] sm:$0xff]
    %v284 = vld [vmem:[#allocation2 + $0x650] sm:$0xff]
    %v285 = vld [vmem:[#allocation2 + $0x658] sm:$0xff]
    %v286 = vld [vmem:[#allocation2 + $0x660] sm:$0xff]
    %v287 = vld [vmem:[#allocation2 + $0x668] sm:$0xff]
    %v288 = vld [vmem:[#allocation2 + $0x670] sm:$0xff]
    %v289 = vld [vmem:[#allocation2 + $0x678] sm:$0xff]
    %v290 = vld [vmem:[#allocation2 + $0x680] sm:$0xff]
    %v291 = vld [vmem:[#allocation2 + $0x688] sm:$0xff]
    %v292 = vld [vmem:[#allocation2 + $0x690] sm:$0xff]
    %v293 = vld [vmem:[#allocation2 + $0x698] sm:$0xff]
    %v294 = vld [vmem:[#allocation2 + $0x6a0] sm:$0xff]
    %v295 = vld [vmem:[#allocation2 + $0x6a8] sm:$0xff]
    %v296 = vld [vmem:[#allocation2 + $0x6b0] sm:$0xff]
    %v297 = vld [vmem:[#allocation2 + $0x6b8] sm:$0xff]
    %v298 = vld [vmem:[#allocation2 + $0x6c0] sm:$0xff]
    %v299 = vld [vmem:[#allocation2 + $0x6c8] sm:$0xff]
    %v300 = vld [vmem:[#allocation2 + $0x6d0] sm:$0xff]
    %v301 = vld [vmem:[#allocation2 + $0x6d8] sm:$0xff]
    %v302 = vld [vmem:[#allocation2 + $0x6e0] sm:$0xff]
    %v303 = vld [vmem:[#allocation2 + $0x6e8] sm:$0xff]
    %v304 = vld [vmem:[#allocation2 + $0x6f0] sm:$0xff]
    %v305 = vld [vmem:[#allocation2 + $0x6f8] sm:$0xff]
    %v306 = vld [vmem:[#allocation2 + $0x700] sm:$0xff]
    %v307 = vld [vmem:[#allocation2 + $0x708] sm:$0xff]
    %v308 = vld [vmem:[#allocation2 + $0x710] sm:$0xff]
    %v309 = vld [vmem:[#allocation2 + $0x718] sm:$0xff]
    %v310 = vld [vmem:[#allocation2 + $0x720] sm:$0xff]
    %v311 = vld [vmem:[#allocation2 + $0x728] sm:$0xff]
    %v312 = vld [vmem:[#allocation2 + $0x730] sm:$0xff]
    %v313 = vld [vmem:[#allocation2 + $0x738] sm:$0xff]
    %v314 = vld [vmem:[#allocation2 + $0x740] sm:$0xff]
    %v315 = vld [vmem:[#allocation2 + $0x748] sm:$0xff]
    %v316 = vld [vmem:[#allocation2 + $0x750] sm:$0xff]
    %v317 = vld [vmem:[#allocation2 + $0x758] sm:$0xff]
    %v318 = vld [vmem:[#allocation2 + $0x760] sm:$0xff]
    %v319 = vld [vmem:[#allocation2 + $0x768] sm:$0xff]
    %v320 = vld [vmem:[#allocation2 + $0x770] sm:$0xff]
    %v321 = vld [vmem:[#allocation2 + $0x778] sm:$0xff]
    %v322 = vld [vmem:[#allocation2 + $0x780] sm:$0xff]
    %v323 = vld [vmem:[#allocation2 + $0x788] sm:$0xff]
    %v324 = vld [vmem:[#allocation2 + $0x790] sm:$0xff]
    %v325 = vld [vmem:[#allocation2 + $0x798] sm:$0xff]
    %v326 = vld [vmem:[#allocation2 + $0x7a0] sm:$0xff]
    %v327 = vld [vmem:[#allocation2 + $0x7a8] sm:$0xff]
    %v328 = vld [vmem:[#allocation2 + $0x7b0] sm:$0xff]
    %v329 = vld [vmem:[#allocation2 + $0x7b8] sm:$0xff]
    %v330 = vld [vmem:[#allocation2 + $0x7c0] sm:$0xff]
    %v331 = vld [vmem:[#allocation2 + $0x7c8] sm:$0xff]
    %v332 = vld [vmem:[#allocation2 + $0x7d0] sm:$0xff]
    %v333 = vld [vmem:[#allocation2 + $0x7d8] sm:$0xff]
    %v334 = vld [vmem:[#allocation2 + $0x7e0] sm:$0xff]
    %v335 = vld [vmem:[#allocation2 + $0x7e8] sm:$0xff]
    %v336 = vld [vmem:[#allocation2 + $0x7f0] sm:$0xff]
    %v337 = vld [vmem:[#allocation2 + $0x7f8] sm:$0xff]
    %v338 = vadd.f32 %v82, %v86
    %v339 = vadd.f32 %v338, %v90
    %v340 = vadd.f32 %v339, %v94
    %v341 = vadd.f32 %v340, %v98
    %v342 = vadd.f32 %v341, %v102
    %v343 = vadd.f32 %v342, %v106
    %v344 = vadd.f32 %v343, %v110
    %v345 = vrot.slane %v344, 4
    %v346 = vadd.f32 %v344, %v345
    %v347 = vrot.slane %v346, 2
    %v348 = vadd.f32 %v346, %v347
    %v349 = vrot.slane %v348, 1
    %v350 = vadd.f32 %v348, %v349
    %v351 = vadd.f32 %v83, %v87
    %v352 = vadd.f32 %v351, %v91
    %v353 = vadd.f32 %v352, %v95
    %v354 = vadd.f32 %v353, %v99
    %v355 = vadd.f32 %v354, %v103
    %v356 = vadd.f32 %v355, %v107
    %v357 = vadd.f32 %v356, %v111
    %v358 = vrot.slane %v357, 4
    %v359 = vadd.f32 %v357, %v358
    %v360 = vrot.slane %v359, 2
    %v361 = vadd.f32 %v359, %v360
    %v362 = vrot.slane %v361, 1
    %v363 = vadd.f32 %v361, %v362
    %v364 = vadd.f32 %v84, %v88
    %v365 = vadd.f32 %v364, %v92
    %v366 = vadd.f32 %v365, %v96
    %v367 = vadd.f32 %v366, %v100
    %v368 = vadd.f32 %v367, %v104
    %v369 = vadd.f32 %v368, %v108
    %v370 = vadd.f32 %v369, %v112
    %v371 = vrot.slane %v370, 4
    %v372 = vadd.f32 %v370, %v371
    %v373 = vrot.slane %v372, 2
    %v374 = vadd.f32 %v372, %v373
    %v375 = vrot.slane %v374, 1
    %v376 = vadd.f32 %v374, %v375
    %v377 = vadd.f32 %v85, %v89
    %v378 = vadd.f32 %v377, %v93
    %v379 = vadd.f32 %v378, %v97
    %v380 = vadd.f32 %v379, %v101
    %v381 = vadd.f32 %v380, %v105
    %v382 = vadd.f32 %v381, %v109
    %v383 = vadd.f32 %v382, %v113
    %v384 = vrot.slane %v383, 4
    %v385 = vadd.f32 %v383, %v384
    %v386 = vrot.slane %v385, 2
    %v387 = vadd.f32 %v385, %v386
    %v388 = vrot.slane %v387, 1
    %v389 = vadd.f32 %v387, %v388
    %v390 = vadd.f32 %v114, %v118
    %v391 = vadd.f32 %v390, %v122
    %v392 = vadd.f32 %v391, %v126
    %v393 = vadd.f32 %v392, %v130
    %v394 = vadd.f32 %v393, %v134
    %v395 = vadd.f32 %v394, %v138
    %v396 = vadd.f32 %v395, %v142
    %v397 = vrot.slane %v396, 4
    %v398 = vadd.f32 %v396, %v397
    %v399 = vrot.slane %v398, 2
    %v400 = vadd.f32 %v398, %v399
    %v401 = vrot.slane %v400, 1
    %v402 = vadd.f32 %v400, %v401
    %v403 = vadd.f32 %v115, %v119
    %v404 = vadd.f32 %v403, %v123
    %v405 = vadd.f32 %v404, %v127
    %v406 = vadd.f32 %v405, %v131
    %v407 = vadd.f32 %v406, %v135
    %v408 = vadd.f32 %v407, %v139
    %v409 = vadd.f32 %v408, %v143
    %v410 = vrot.slane %v409, 4
    %v411 = vadd.f32 %v409, %v410
    %v412 = vrot.slane %v411, 2
    %v413 = vadd.f32 %v411, %v412
    %v414 = vrot.slane %v413, 1
    %v415 = vadd.f32 %v413, %v414
    %v416 = vadd.f32 %v116, %v120
    %v417 = vadd.f32 %v416, %v124
    %v418 = vadd.f32 %v417, %v128
    %v419 = vadd.f32 %v418, %v132
    %v420 = vadd.f32 %v419, %v136
    %v421 = vadd.f32 %v420, %v140
    %v422 = vadd.f32 %v421, %v144
    %v423 = vrot.slane %v422, 4
    %v424 = vadd.f32 %v422, %v423
    %v425 = vrot.slane %v424, 2
    %v426 = vadd.f32 %v424, %v425
    %v427 = vrot.slane %v426, 1
    %v428 = vadd.f32 %v426, %v427
    %v429 = vadd.f32 %v117, %v121
    %v430 = vadd.f32 %v429, %v125
    %v431 = vadd.f32 %v430, %v129
    %v432 = vadd.f32 %v431, %v133
    %v433 = vadd.f32 %v432, %v137
    %v434 = vadd.f32 %v433, %v141
    %v435 = vadd.f32 %v434, %v145
    %v436 = vrot.slane %v435, 4
    %v437 = vadd.f32 %v435, %v436
    %v438 = vrot.slane %v437, 2
    %v439 = vadd.f32 %v437, %v438
    %v440 = vrot.slane %v439, 1
    %v441 = vadd.f32 %v439, %v440
    %v442 = vadd.f32 %v146, %v150
    %v443 = vadd.f32 %v442, %v154
    %v444 = vadd.f32 %v443, %v158
    %v445 = vadd.f32 %v444, %v162
    %v446 = vadd.f32 %v445, %v166
    %v447 = vadd.f32 %v446, %v170
    %v448 = vadd.f32 %v447, %v174
    %v449 = vrot.slane %v448, 4
    %v450 = vadd.f32 %v448, %v449
    %v451 = vrot.slane %v450, 2
    %v452 = vadd.f32 %v450, %v451
    %v453 = vrot.slane %v452, 1
    %v454 = vadd.f32 %v452, %v453
    %v455 = vadd.f32 %v147, %v151
    %v456 = vadd.f32 %v455, %v155
    %v457 = vadd.f32 %v456, %v159
    %v458 = vadd.f32 %v457, %v163
    %v459 = vadd.f32 %v458, %v167
    %v460 = vadd.f32 %v459, %v171
    %v461 = vadd.f32 %v460, %v175
    %v462 = vrot.slane %v461, 4
    %v463 = vadd.f32 %v461, %v462
    %v464 = vrot.slane %v463, 2
    %v465 = vadd.f32 %v463, %v464
    %v466 = vrot.slane %v465, 1
    %v467 = vadd.f32 %v465, %v466
    %v468 = vadd.f32 %v148, %v152
    %v469 = vadd.f32 %v468, %v156
    %v470 = vadd.f32 %v469, %v160
    %v471 = vadd.f32 %v470, %v164
    %v472 = vadd.f32 %v471, %v168
    %v473 = vadd.f32 %v472, %v172
    %v474 = vadd.f32 %v473, %v176
    %v475 = vrot.slane %v474, 4
    %v476 = vadd.f32 %v474, %v475
    %v477 = vrot.slane %v476, 2
    %v478 = vadd.f32 %v476, %v477
    %v479 = vrot.slane %v478, 1
    %v480 = vadd.f32 %v478, %v479
    %v481 = vadd.f32 %v149, %v153
    %v482 = vadd.f32 %v481, %v157
    %v483 = vadd.f32 %v482, %v161
    %v484 = vadd.f32 %v483, %v165
    %v485 = vadd.f32 %v484, %v169
    %v486 = vadd.f32 %v485, %v173
    %v487 = vadd.f32 %v486, %v177
    %v488 = vrot.slane %v487, 4
    %v489 = vadd.f32 %v487, %v488
    %v490 = vrot.slane %v489, 2
    %v491 = vadd.f32 %v489, %v490
    %v492 = vrot.slane %v491, 1
    %v493 = vadd.f32 %v491, %v492
    %v494 = vadd.f32 %v178, %v182
    %v495 = vadd.f32 %v494, %v186
    %v496 = vadd.f32 %v495, %v190
    %v497 = vadd.f32 %v496, %v194
    %v498 = vadd.f32 %v497, %v198
    %v499 = vadd.f32 %v498, %v202
    %v500 = vadd.f32 %v499, %v206
    %v501 = vrot.slane %v500, 4
    %v502 = vadd.f32 %v500, %v501
    %v503 = vrot.slane %v502, 2
    %v504 = vadd.f32 %v502, %v503
    %v505 = vrot.slane %v504, 1
    %v506 = vadd.f32 %v504, %v505
    %v507 = vadd.f32 %v179, %v183
    %v508 = vadd.f32 %v507, %v187
    %v509 = vadd.f32 %v508, %v191
    %v510 = vadd.f32 %v509, %v195
    %v511 = vadd.f32 %v510, %v199
    %v512 = vadd.f32 %v511, %v203
    %v513 = vadd.f32 %v512, %v207
    %v514 = vrot.slane %v513, 4
    %v515 = vadd.f32 %v513, %v514
    %v516 = vrot.slane %v515, 2
    %v517 = vadd.f32 %v515, %v516
    %v518 = vrot.slane %v517, 1
    %v519 = vadd.f32 %v517, %v518
    %v520 = vadd.f32 %v180, %v184
    %v521 = vadd.f32 %v520, %v188
    %v522 = vadd.f32 %v521, %v192
    %v523 = vadd.f32 %v522, %v196
    %v524 = vadd.f32 %v523, %v200
    %v525 = vadd.f32 %v524, %v204
    %v526 = vadd.f32 %v525, %v208
    %v527 = vrot.slane %v526, 4
    %v528 = vadd.f32 %v526, %v527
    %v529 = vrot.slane %v528, 2
    %v530 = vadd.f32 %v528, %v529
    %v531 = vrot.slane %v530, 1
    %v532 = vadd.f32 %v530, %v531
    %v533 = vadd.f32 %v181, %v185
    %v534 = vadd.f32 %v533, %v189
    %v535 = vadd.f32 %v534, %v193
    %v536 = vadd.f32 %v535, %v197
    %v537 = vadd.f32 %v536, %v201
    %v538 = vadd.f32 %v537, %v205
    %v539 = vadd.f32 %v538, %v209
    %v540 = vrot.slane %v539, 4
    %v541 = vadd.f32 %v539, %v540
    %v542 = vrot.slane %v541, 2
    %v543 = vadd.f32 %v541, %v542
    %v544 = vrot.slane %v543, 1
    %v545 = vadd.f32 %v543, %v544
    %v546 = vadd.f32 %v210, %v214
    %v547 = vadd.f32 %v546, %v218
    %v548 = vadd.f32 %v547, %v222
    %v549 = vadd.f32 %v548, %v226
    %v550 = vadd.f32 %v549, %v230
    %v551 = vadd.f32 %v550, %v234
    %v552 = vadd.f32 %v551, %v238
    %v553 = vrot.slane %v552, 4
    %v554 = vadd.f32 %v552, %v553
    %v555 = vrot.slane %v554, 2
    %v556 = vadd.f32 %v554, %v555
    %v557 = vrot.slane %v556, 1
    %v558 = vadd.f32 %v556, %v557
    %v559 = vadd.f32 %v211, %v215
    %v560 = vadd.f32 %v559, %v219
    %v561 = vadd.f32 %v560, %v223
    %v562 = vadd.f32 %v561, %v227
    %v563 = vadd.f32 %v562, %v231
    %v564 = vadd.f32 %v563, %v235
    %v565 = vadd.f32 %v564, %v239
    %v566 = vrot.slane %v565, 4
    %v567 = vadd.f32 %v565, %v566
    %v568 = vrot.slane %v567, 2
    %v569 = vadd.f32 %v567, %v568
    %v570 = vrot.slane %v569, 1
    %v571 = vadd.f32 %v569, %v570
    %v572 = vadd.f32 %v212, %v216
    %v573 = vadd.f32 %v572, %v220
    %v574 = vadd.f32 %v573, %v224
    %v575 = vadd.f32 %v574, %v228
    %v576 = vadd.f32 %v575, %v232
    %v577 = vadd.f32 %v576, %v236
    %v578 = vadd.f32 %v577, %v240
    %v579 = vrot.slane %v578, 4
    %v580 = vadd.f32 %v578, %v579
    %v581 = vrot.slane %v580, 2
    %v582 = vadd.f32 %v580, %v581
    %v583 = vrot.slane %v582, 1
    %v584 = vadd.f32 %v582, %v583
    %v585 = vadd.f32 %v213, %v217
    %v586 = vadd.f32 %v585, %v221
    %v587 = vadd.f32 %v586, %v225
    %v588 = vadd.f32 %v587, %v229
    %v589 = vadd.f32 %v588, %v233
    %v590 = vadd.f32 %v589, %v237
    %v591 = vadd.f32 %v590, %v241
    %v592 = vrot.slane %v591, 4
    %v593 = vadd.f32 %v591, %v592
    %v594 = vrot.slane %v593, 2
    %v595 = vadd.f32 %v593, %v594
    %v596 = vrot.slane %v595, 1
    %v597 = vadd.f32 %v595, %v596
    %v598 = vadd.f32 %v242, %v246
    %v599 = vadd.f32 %v598, %v250
    %v600 = vadd.f32 %v599, %v254
    %v601 = vadd.f32 %v600, %v258
    %v602 = vadd.f32 %v601, %v262
    %v603 = vadd.f32 %v602, %v266
    %v604 = vadd.f32 %v603, %v270
    %v605 = vrot.slane %v604, 4
    %v606 = vadd.f32 %v604, %v605
    %v607 = vrot.slane %v606, 2
    %v608 = vadd.f32 %v606, %v607
    %v609 = vrot.slane %v608, 1
    %v610 = vadd.f32 %v608, %v609
    %v611 = vadd.f32 %v243, %v247
    %v612 = vadd.f32 %v611, %v251
    %v613 = vadd.f32 %v612, %v255
    %v614 = vadd.f32 %v613, %v259
    %v615 = vadd.f32 %v614, %v263
    %v616 = vadd.f32 %v615, %v267
    %v617 = vadd.f32 %v616, %v271
    %v618 = vrot.slane %v617, 4
    %v619 = vadd.f32 %v617, %v618
    %v620 = vrot.slane %v619, 2
    %v621 = vadd.f32 %v619, %v620
    %v622 = vrot.slane %v621, 1
    %v623 = vadd.f32 %v621, %v622
    %v624 = vadd.f32 %v244, %v248
    %v625 = vadd.f32 %v624, %v252
    %v626 = vadd.f32 %v625, %v256
    %v627 = vadd.f32 %v626, %v260
    %v628 = vadd.f32 %v627, %v264
    %v629 = vadd.f32 %v628, %v268
    %v630 = vadd.f32 %v629, %v272
    %v631 = vrot.slane %v630, 4
    %v632 = vadd.f32 %v630, %v631
    %v633 = vrot.slane %v632, 2
    %v634 = vadd.f32 %v632, %v633
    %v635 = vrot.slane %v634, 1
    %v636 = vadd.f32 %v634, %v635
    %v637 = vadd.f32 %v245, %v249
    %v638 = vadd.f32 %v637, %v253
    %v639 = vadd.f32 %v638, %v257
    %v640 = vadd.f32 %v639, %v261
    %v641 = vadd.f32 %v640, %v265
    %v642 = vadd.f32 %v641, %v269
    %v643 = vadd.f32 %v642, %v273
    %v644 = vrot.slane %v643, 4
    %v645 = vadd.f32 %v643, %v644
    %v646 = vrot.slane %v645, 2
    %v647 = vadd.f32 %v645, %v646
    %v648 = vrot.slane %v647, 1
    %v649 = vadd.f32 %v647, %v648
    %v650 = vadd.f32 %v274, %v278
    %v651 = vadd.f32 %v650, %v282
    %v652 = vadd.f32 %v651, %v286
    %v653 = vadd.f32 %v652, %v290
    %v654 = vadd.f32 %v653, %v294
    %v655 = vadd.f32 %v654, %v298
    %v656 = vadd.f32 %v655, %v302
    %v657 = vrot.slane %v656, 4
    %v658 = vadd.f32 %v656, %v657
    %v659 = vrot.slane %v658, 2
    %v660 = vadd.f32 %v658, %v659
    %v661 = vrot.slane %v660, 1
    %v662 = vadd.f32 %v660, %v661
    %v663 = vadd.f32 %v275, %v279
    %v664 = vadd.f32 %v663, %v283
    %v665 = vadd.f32 %v664, %v287
    %v666 = vadd.f32 %v665, %v291
    %v667 = vadd.f32 %v666, %v295
    %v668 = vadd.f32 %v667, %v299
    %v669 = vadd.f32 %v668, %v303
    %v670 = vrot.slane %v669, 4
    %v671 = vadd.f32 %v669, %v670
    %v672 = vrot.slane %v671, 2
    %v673 = vadd.f32 %v671, %v672
    %v674 = vrot.slane %v673, 1
    %v675 = vadd.f32 %v673, %v674
    %v676 = vadd.f32 %v276, %v280
    %v677 = vadd.f32 %v676, %v284
    %v678 = vadd.f32 %v677, %v288
    %v679 = vadd.f32 %v678, %v292
    %v680 = vadd.f32 %v679, %v296
    %v681 = vadd.f32 %v680, %v300
    %v682 = vadd.f32 %v681, %v304
    %v683 = vrot.slane %v682, 4
    %v684 = vadd.f32 %v682, %v683
    %v685 = vrot.slane %v684, 2
    %v686 = vadd.f32 %v684, %v685
    %v687 = vrot.slane %v686, 1
    %v688 = vadd.f32 %v686, %v687
    %v689 = vadd.f32 %v277, %v281
    %v690 = vadd.f32 %v689, %v285
    %v691 = vadd.f32 %v690, %v289
    %v692 = vadd.f32 %v691, %v293
    %v693 = vadd.f32 %v692, %v297
    %v694 = vadd.f32 %v693, %v301
    %v695 = vadd.f32 %v694, %v305
    %v696 = vrot.slane %v695, 4
    %v697 = vadd.f32 %v695, %v696
    %v698 = vrot.slane %v697, 2
    %v699 = vadd.f32 %v697, %v698
    %v700 = vrot.slane %v699, 1
    %v701 = vadd.f32 %v699, %v700
    %v702 = vadd.f32 %v306, %v310
    %v703 = vadd.f32 %v702, %v314
    %v704 = vadd.f32 %v703, %v318
    %v705 = vadd.f32 %v704, %v322
    %v706 = vadd.f32 %v705, %v326
    %v707 = vadd.f32 %v706, %v330
    %v708 = vadd.f32 %v707, %v334
    %v709 = vrot.slane %v708, 4
    %v710 = vadd.f32 %v708, %v709
    %v711 = vrot.slane %v710, 2
    %v712 = vadd.f32 %v710, %v711
    %v713 = vrot.slane %v712, 1
    %v714 = vadd.f32 %v712, %v713
    %v715 = vadd.f32 %v307, %v311
    %v716 = vadd.f32 %v715, %v315
    %v717 = vadd.f32 %v716, %v319
    %v718 = vadd.f32 %v717, %v323
    %v719 = vadd.f32 %v718, %v327
    %v720 = vadd.f32 %v719, %v331
    %v721 = vadd.f32 %v720, %v335
    %v722 = vrot.slane %v721, 4
    %v723 = vadd.f32 %v721, %v722
    %v724 = vrot.slane %v723, 2
    %v725 = vadd.f32 %v723, %v724
    %v726 = vrot.slane %v725, 1
    %v727 = vadd.f32 %v725, %v726
    %v728 = vadd.f32 %v308, %v312
    %v729 = vadd.f32 %v728, %v316
    %v730 = vadd.f32 %v729, %v320
    %v731 = vadd.f32 %v730, %v324
    %v732 = vadd.f32 %v731, %v328
    %v733 = vadd.f32 %v732, %v332
    %v734 = vadd.f32 %v733, %v336
    %v735 = vrot.slane %v734, 4
    %v736 = vadd.f32 %v734, %v735
    %v737 = vrot.slane %v736, 2
    %v738 = vadd.f32 %v736, %v737
    %v739 = vrot.slane %v738, 1
    %v740 = vadd.f32 %v738, %v739
    %v741 = vadd.f32 %v309, %v313
    %v742 = vadd.f32 %v741, %v317
    %v743 = vadd.f32 %v742, %v321
    %v744 = vadd.f32 %v743, %v325
    %v745 = vadd.f32 %v744, %v329
    %v746 = vadd.f32 %v745, %v333
    %v747 = vadd.f32 %v746, %v337
    %v748 = vrot.slane %v747, 4
    %v749 = vadd.f32 %v747, %v748
    %v750 = vrot.slane %v749, 2
    %v751 = vadd.f32 %v749, %v750
    %v752 = vrot.slane %v751, 1
    %v753 = vadd.f32 %v751, %v752
    %v754 = vmul.f32 %v350, 0.015625
    %v755 = vmul.f32 %v363, 0.015625
    %v756 = vmul.f32 %v376, 0.015625
    %v757 = vmul.f32 %v389, 0.015625
    %v758 = vmul.f32 %v402, 0.015625
    %v759 = vmul.f32 %v415, 0.015625
    %v760 = vmul.f32 %v428, 0.015625
    %v761 = vmul.f32 %v441, 0.015625
    %v762 = vmul.f32 %v454, 0.015625
    %v763 = vmul.f32 %v467, 0.015625
    %v764 = vmul.f32 %v480, 0.015625
    %v765 = vmul.f32 %v493, 0.015625
    %v766 = vmul.f32 %v506, 0.015625
    %v767 = vmul.f32 %v519, 0.015625
    %v768 = vmul.f32 %v532, 0.015625
    %v769 = vmul.f32 %v545, 0.015625
    %v770 = vmul.f32 %v558, 0.015625
    %v771 = vmul.f32 %v571, 0.015625
    %v772 = vmul.f32 %v584, 0.015625
    %v773 = vmul.f32 %v597, 0.015625
    %v774 = vmul.f32 %v610, 0.015625
    %v775 = vmul.f32 %v623, 0.015625
    %v776 = vmul.f32 %v636, 0.015625
    %v777 = vmul.f32 %v649, 0.015625
    %v778 = vmul.f32 %v662, 0.015625
    %v779 = vmul.f32 %v675, 0.015625
    %v780 = vmul.f32 %v688, 0.015625
    %v781 = vmul.f32 %v701, 0.015625
    %v782 = vmul.f32 %v714, 0.015625
    %v783 = vmul.f32 %v727, 0.015625
    %v784 = vmul.f32 %v740, 0.015625
    %v785 = vmul.f32 %v753, 0.015625
    %v786 = vld [vmem:[#allocation5] sm:$0xff]
    %v787 = vld [vmem:[#allocation5 + $0x8] sm:$0xff]
    %v788 = vld [vmem:[#allocation5 + $0x10] sm:$0xff]
    %v789 = vld [vmem:[#allocation5 + $0x18] sm:$0xff]
    %v790 = vld [vmem:[#allocation5 + $0x20] sm:$0xff]
    %v791 = vld [vmem:[#allocation5 + $0x28] sm:$0xff]
    %v792 = vld [vmem:[#allocation5 + $0x30] sm:$0xff]
    %v793 = vld [vmem:[#allocation5 + $0x38] sm:$0xff]
    %v794 = vld [vmem:[#allocation5 + $0x40] sm:$0xff]
    %v795 = vld [vmem:[#allocation5 + $0x48] sm:$0xff]
    %v796 = vld [vmem:[#allocation5 + $0x50] sm:$0xff]
    %v797 = vld [vmem:[#allocation5 + $0x58] sm:$0xff]
    %v798 = vld [vmem:[#allocation5 + $0x60] sm:$0xff]
    %v799 = vld [vmem:[#allocation5 + $0x68] sm:$0xff]
    %v800 = vld [vmem:[#allocation5 + $0x70] sm:$0xff]
    %v801 = vld [vmem:[#allocation5 + $0x78] sm:$0xff]
    %v802 = vld [vmem:[#allocation5 + $0x80] sm:$0xff]
    %v803 = vld [vmem:[#allocation5 + $0x88] sm:$0xff]
    %v804 = vld [vmem:[#allocation5 + $0x90] sm:$0xff]
    %v805 = vld [vmem:[#allocation5 + $0x98] sm:$0xff]
    %v806 = vld [vmem:[#allocation5 + $0xa0] sm:$0xff]
    %v807 = vld [vmem:[#allocation5 + $0xa8] sm:$0xff]
    %v808 = vld [vmem:[#allocation5 + $0xb0] sm:$0xff]
    %v809 = vld [vmem:[#allocation5 + $0xb8] sm:$0xff]
    %v810 = vld [vmem:[#allocation5 + $0xc0] sm:$0xff]
    %v811 = vld [vmem:[#allocation5 + $0xc8] sm:$0xff]
    %v812 = vld [vmem:[#allocation5 + $0xd0] sm:$0xff]
    %v813 = vld [vmem:[#allocation5 + $0xd8] sm:$0xff]
    %v814 = vld [vmem:[#allocation5 + $0xe0] sm:$0xff]
    %v815 = vld [vmem:[#allocation5 + $0xe8] sm:$0xff]
    %v816 = vld [vmem:[#allocation5 + $0xf0] sm:$0xff]
    %v817 = vld [vmem:[#allocation5 + $0xf8] sm:$0xff]
    %v818 = vld [vmem:[#allocation5 + $0x100] sm:$0xff]
    %v819 = vld [vmem:[#allocation5 + $0x108] sm:$0xff]
    %v820 = vld [vmem:[#allocation5 + $0x110] sm:$0xff]
    %v821 = vld [vmem:[#allocation5 + $0x118] sm:$0xff]
    %v822 = vld [vmem:[#allocation5 + $0x120] sm:$0xff]
    %v823 = vld [vmem:[#allocation5 + $0x128] sm:$0xff]
    %v824 = vld [vmem:[#allocation5 + $0x130] sm:$0xff]
    %v825 = vld [vmem:[#allocation5 + $0x138] sm:$0xff]
    %v826 = vld [vmem:[#allocation5 + $0x140] sm:$0xff]
    %v827 = vld [vmem:[#allocation5 + $0x148] sm:$0xff]
    %v828 = vld [vmem:[#allocation5 + $0x150] sm:$0xff]
    %v829 = vld [vmem:[#allocation5 + $0x158] sm:$0xff]
    %v830 = vld [vmem:[#allocation5 + $0x160] sm:$0xff]
    %v831 = vld [vmem:[#allocation5 + $0x168] sm:$0xff]
    %v832 = vld [vmem:[#allocation5 + $0x170] sm:$0xff]
    %v833 = vld [vmem:[#allocation5 + $0x178] sm:$0xff]
    %v834 = vld [vmem:[#allocation5 + $0x180] sm:$0xff]
    %v835 = vld [vmem:[#allocation5 + $0x188] sm:$0xff]
    %v836 = vld [vmem:[#allocation5 + $0x190] sm:$0xff]
    %v837 = vld [vmem:[#allocation5 + $0x198] sm:$0xff]
    %v838 = vld [vmem:[#allocation5 + $0x1a0] sm:$0xff]
    %v839 = vld [vmem:[#allocation5 + $0x1a8] sm:$0xff]
    %v840 = vld [vmem:[#allocation5 + $0x1b0] sm:$0xff]
    %v841 = vld [vmem:[#allocation5 + $0x1b8] sm:$0xff]
    %v842 = vld [vmem:[#allocation5 + $0x1c0] sm:$0xff]
    %v843 = vld [vmem:[#allocation5 + $0x1c8] sm:$0xff]
    %v844 = vld [vmem:[#allocation5 + $0x1d0] sm:$0xff]
    %v845 = vld [vmem:[#allocation5 + $0x1d8] sm:$0xff]
    %v846 = vld [vmem:[#allocation5 + $0x1e0] sm:$0xff]
    %v847 = vld [vmem:[#allocation5 + $0x1e8] sm:$0xff]
    %v848 = vld [vmem:[#allocation5 + $0x1f0] sm:$0xff]
    %v849 = vld [vmem:[#allocation5 + $0x1f8] sm:$0xff]
    %v850 = vld [vmem:[#allocation5 + $0x200] sm:$0xff]
    %v851 = vld [vmem:[#allocation5 + $0x208] sm:$0xff]
    %v852 = vld [vmem:[#allocation5 + $0x210] sm:$0xff]
    %v853 = vld [vmem:[#allocation5 + $0x218] sm:$0xff]
    %v854 = vld [vmem:[#allocation5 + $0x220] sm:$0xff]
    %v855 = vld [vmem:[#allocation5 + $0x228] sm:$0xff]
    %v856 = vld [vmem:[#allocation5 + $0x230] sm:$0xff]
    %v857 = vld [vmem:[#allocation5 + $0x238] sm:$0xff]
    %v858 = vld [vmem:[#allocation5 + $0x240] sm:$0xff]
    %v859 = vld [vmem:[#allocation5 + $0x248] sm:$0xff]
    %v860 = vld [vmem:[#allocation5 + $0x250] sm:$0xff]
    %v861 = vld [vmem:[#allocation5 + $0x258] sm:$0xff]
    %v862 = vld [vmem:[#allocation5 + $0x260] sm:$0xff]
    %v863 = vld [vmem:[#allocation5 + $0x268] sm:$0xff]
    %v864 = vld [vmem:[#allocation5 + $0x270] sm:$0xff]
    %v865 = vld [vmem:[#allocation5 + $0x278] sm:$0xff]
    %v866 = vld [vmem:[#allocation5 + $0x280] sm:$0xff]
    %v867 = vld [vmem:[#allocation5 + $0x288] sm:$0xff]
    %v868 = vld [vmem:[#allocation5 + $0x290] sm:$0xff]
    %v869 = vld [vmem:[#allocation5 + $0x298] sm:$0xff]
    %v870 = vld [vmem:[#allocation5 + $0x2a0] sm:$0xff]
    %v871 = vld [vmem:[#allocation5 + $0x2a8] sm:$0xff]
    %v872 = vld [vmem:[#allocation5 + $0x2b0] sm:$0xff]
    %v873 = vld [vmem:[#allocation5 + $0x2b8] sm:$0xff]
    %v874 = vld [vmem:[#allocation5 + $0x2c0] sm:$0xff]
    %v875 = vld [vmem:[#allocation5 + $0x2c8] sm:$0xff]
    %v876 = vld [vmem:[#allocation5 + $0x2d0] sm:$0xff]
    %v877 = vld [vmem:[#allocation5 + $0x2d8] sm:$0xff]
    %v878 = vld [vmem:[#allocation5 + $0x2e0] sm:$0xff]
    %v879 = vld [vmem:[#allocation5 + $0x2e8] sm:$0xff]
    %v880 = vld [vmem:[#allocation5 + $0x2f0] sm:$0xff]
    %v881 = vld [vmem:[#allocation5 + $0x2f8] sm:$0xff]
    %v882 = vld [vmem:[#allocation5 + $0x300] sm:$0xff]
    %v883 = vld [vmem:[#allocation5 + $0x308] sm:$0xff]
    %v884 = vld [vmem:[#allocation5 + $0x310] sm:$0xff]
    %v885 = vld [vmem:[#allocation5 + $0x318] sm:$0xff]
    %v886 = vld [vmem:[#allocation5 + $0x320] sm:$0xff]
    %v887 = vld [vmem:[#allocation5 + $0x328] sm:$0xff]
    %v888 = vld [vmem:[#allocation5 + $0x330] sm:$0xff]
    %v889 = vld [vmem:[#allocation5 + $0x338] sm:$0xff]
    %v890 = vld [vmem:[#allocation5 + $0x340] sm:$0xff]
    %v891 = vld [vmem:[#allocation5 + $0x348] sm:$0xff]
    %v892 = vld [vmem:[#allocation5 + $0x350] sm:$0xff]
    %v893 = vld [vmem:[#allocation5 + $0x358] sm:$0xff]
    %v894 = vld [vmem:[#allocation5 + $0x360] sm:$0xff]
    %v895 = vld [vmem:[#allocation5 + $0x368] sm:$0xff]
    %v896 = vld [vmem:[#allocation5 + $0x370] sm:$0xff]
    %v897 = vld [vmem:[#allocation5 + $0x378] sm:$0xff]
    %v898 = vld [vmem:[#allocation5 + $0x380] sm:$0xff]
    %v899 = vld [vmem:[#allocation5 + $0x388] sm:$0xff]
    %v900 = vld [vmem:[#allocation5 + $0x390] sm:$0xff]
    %v901 = vld [vmem:[#allocation5 + $0x398] sm:$0xff]
    %v902 = vld [vmem:[#allocation5 + $0x3a0] sm:$0xff]
    %v903 = vld [vmem:[#allocation5 + $0x3a8] sm:$0xff]
    %v904 = vld [vmem:[#allocation5 + $0x3b0] sm:$0xff]
    %v905 = vld [vmem:[#allocation5 + $0x3b8] sm:$0xff]
    %v906 = vld [vmem:[#allocation5 + $0x3c0] sm:$0xff]
    %v907 = vld [vmem:[#allocation5 + $0x3c8] sm:$0xff]
    %v908 = vld [vmem:[#allocation5 + $0x3d0] sm:$0xff]
    %v909 = vld [vmem:[#allocation5 + $0x3d8] sm:$0xff]
    %v910 = vld [vmem:[#allocation5 + $0x3e0] sm:$0xff]
    %v911 = vld [vmem:[#allocation5 + $0x3e8] sm:$0xff]
    %v912 = vld [vmem:[#allocation5 + $0x3f0] sm:$0xff]
    %v913 = vld [vmem:[#allocation5 + $0x3f8] sm:$0xff]
    %v914 = vld [vmem:[%s2] sm:$0x3]
    %v916 = vlaneseq
    %v917 = vshrl.u32 %v916, 7
    %v918 = vsub.s32 0, %v917
    %v919 = vrot.slane %v914, %v918
    %v920 = vlaneseq
    %v921 = vshrl.u32 %v920, 7
    %v922 = vsub.s32 1, %v921
    %v923 = vrot.slane %v914, %v922
    %vm958 = vcmask 1041409
    %v959 = vsel %vm958, %v758, %v754
    %vm960 = vcmask 1042434
    %v961 = vsel %vm960, %v762, %v959
    %vm962 = vcmask 1043459
    %v963 = vsel %vm962, %v766, %v961
    %vm964 = vcmask 1044484
    %v965 = vsel %vm964, %v770, %v963
    %vm966 = vcmask 1045509
    %v967 = vsel %vm966, %v774, %v965
    %vm968 = vcmask 1046534
    %v969 = vsel %vm968, %v778, %v967
    %vm970 = vcmask 1047559
    %v971 = vsel %vm970, %v782, %v969
    %v972 = vsel %vm958, %v759, %v755
    %v973 = vsel %vm960, %v763, %v972
    %v974 = vsel %vm962, %v767, %v973
    %v975 = vsel %vm964, %v771, %v974
    %v976 = vsel %vm966, %v775, %v975
    %v977 = vsel %vm968, %v779, %v976
    %v978 = vsel %vm970, %v783, %v977
    %v979 = vsel %vm958, %v760, %v756
    %v980 = vsel %vm960, %v764, %v979
    %v981 = vsel %vm962, %v768, %v980
    %v982 = vsel %vm964, %v772, %v981
    %v983 = vsel %vm966, %v776, %v982
    %v984 = vsel %vm968, %v780, %v983
    %v985 = vsel %vm970, %v784, %v984
    %v986 = vsel %vm958, %v761, %v757
    %v987 = vsel %vm960, %v765, %v986
    %v988 = vsel %vm962, %v769, %v987
    %v989 = vsel %vm964, %v773, %v988
    %v990 = vsel %vm966, %v777, %v989
    %v991 = vsel %vm968, %v781, %v990
    %v992 = vsel %vm970, %v785, %v991
    %997 = vmatprep.subr.mxu0 %v787
    %998 = vmatpush1.msra.mxu0 %v786
    %999 = vmatprep.subr.mxu0 %v789
    %1000 = vmatpush1.msra.mxu0 %v788
    %1001 = vmatprep.subr.mxu0 %v791
    %1002 = vmatpush1.msra.mxu0 %v790
    %1003 = vmatprep.subr.mxu0 %v793
    %1004 = vmatpush1.msra.mxu0 %v792
    %1005 = vmatprep.subr.mxu0 %v795
    %1006 = vmatpush1.msra.mxu0 %v794
    %1007 = vmatprep.subr.mxu0 %v797
    %1008 = vmatpush1.msra.mxu0 %v796
    %1009 = vmatprep.subr.mxu0 %v799
    %1010 = vmatpush1.msra.mxu0 %v798
    %1011 = vmatprep.subr.mxu0 %v801
    %1012 = vmatpush1.msra.mxu0 %v800
    %1013 = vmatprep.subr.mxu0 %v803
    %1014 = vmatpush1.msra.mxu0 %v802
    %1015 = vmatprep.subr.mxu0 %v805
    %1016 = vmatpush1.msra.mxu0 %v804
    %1017 = vmatprep.subr.mxu0 %v807
    %1018 = vmatpush1.msra.mxu0 %v806
    %1019 = vmatprep.subr.mxu0 %v809
    %1020 = vmatpush1.msra.mxu0 %v808
    %1021 = vmatprep.subr.mxu0 %v811
    %1022 = vmatpush1.msra.mxu0 %v810
    %1023 = vmatprep.subr.mxu0 %v813
    %1024 = vmatpush1.msra.mxu0 %v812
    %1025 = vmatprep.subr.mxu0 %v815
    %1026 = vmatpush1.msra.mxu0 %v814
    %1027 = vmatprep.subr.mxu0 %v817
    %1028 = vmatpush1.msra.mxu0 %v816
    %1029 = vmatprep.subr.mxu0 %v819
    %1030 = vmatpush1.msra.mxu0 %v818
    %1031 = vmatprep.subr.mxu0 %v821
    %1032 = vmatpush1.msra.mxu0 %v820
    %1033 = vmatprep.subr.mxu0 %v823
    %1034 = vmatpush1.msra.mxu0 %v822
    %1035 = vmatprep.subr.mxu0 %v825
    %1036 = vmatpush1.msra.mxu0 %v824
    %1037 = vmatprep.subr.mxu0 %v827
    %1038 = vmatpush1.msra.mxu0 %v826
    %1039 = vmatprep.subr.mxu0 %v829
    %1040 = vmatpush1.msra.mxu0 %v828
    %1041 = vmatprep.subr.mxu0 %v831
    %1042 = vmatpush1.msra.mxu0 %v830
    %1043 = vmatprep.subr.mxu0 %v833
    %1044 = vmatpush1.msra.mxu0 %v832
    %1045 = vmatprep.subr.mxu0 %v835
    %1046 = vmatpush1.msra.mxu0 %v834
    %1047 = vmatprep.subr.mxu0 %v837
    %1048 = vmatpush1.msra.mxu0 %v836
    %1049 = vmatprep.subr.mxu0 %v839
    %1050 = vmatpush1.msra.mxu0 %v838
    %1051 = vmatprep.subr.mxu0 %v841
    %1052 = vmatpush1.msra.mxu0 %v840
    %1053 = vmatprep.subr.mxu0 %v843
    %1054 = vmatpush1.msra.mxu0 %v842
    %1055 = vmatprep.subr.mxu0 %v845
    %1056 = vmatpush1.msra.mxu0 %v844
    %1057 = vmatprep.subr.mxu0 %v847
    %1058 = vmatpush1.msra.mxu0 %v846
    %1059 = vmatprep.subr.mxu0 %v849
    %1060 = vmatpush1.msra.mxu0 %v848
    %1061 = vmatprep.mubr.f32.mxu0 %v978
    %1062 = vmatmul.mubr.f32.gmra.mrb[0].mxu0 %v971
    %v1063 = vpop.f32.mrb[0].mxu0
    %v1064 = vadd.f32 %v919, %v1063
    %v1065 = vpop.f32.mrb[0].mxu0
    %v1066 = vadd.f32 %v923, %v1065
    %1067 = vdwg.mxu0
    %1068 = vmatprep.subr.mxu0 %v851
    %1069 = vmatpush1.msra.mxu0 %v850
    %1070 = vmatprep.subr.mxu0 %v853
    %1071 = vmatpush1.msra.mxu0 %v852
    %1072 = vmatprep.subr.mxu0 %v855
    %1073 = vmatpush1.msra.mxu0 %v854
    %1074 = vmatprep.subr.mxu0 %v857
    %1075 = vmatpush1.msra.mxu0 %v856
    %1076 = vmatprep.subr.mxu0 %v859
    %1077 = vmatpush1.msra.mxu0 %v858
    %1078 = vmatprep.subr.mxu0 %v861
    %1079 = vmatpush1.msra.mxu0 %v860
    %1080 = vmatprep.subr.mxu0 %v863
    %1081 = vmatpush1.msra.mxu0 %v862
    %1082 = vmatprep.subr.mxu0 %v865
    %1083 = vmatpush1.msra.mxu0 %v864
    %1084 = vmatprep.subr.mxu0 %v867
    %1085 = vmatpush1.msra.mxu0 %v866
    %1086 = vmatprep.subr.mxu0 %v869
    %1087 = vmatpush1.msra.mxu0 %v868
    %1088 = vmatprep.subr.mxu0 %v871
    %1089 = vmatpush1.msra.mxu0 %v870
    %1090 = vmatprep.subr.mxu0 %v873
    %1091 = vmatpush1.msra.mxu0 %v872
    %1092 = vmatprep.subr.mxu0 %v875
    %1093 = vmatpush1.msra.mxu0 %v874
    %1094 = vmatprep.subr.mxu0 %v877
    %1095 = vmatpush1.msra.mxu0 %v876
    %1096 = vmatprep.subr.mxu0 %v879
    %1097 = vmatpush1.msra.mxu0 %v878
    %1098 = vmatprep.subr.mxu0 %v881
    %1099 = vmatpush1.msra.mxu0 %v880
    %1100 = vmatprep.subr.mxu0 %v883
    %1101 = vmatpush1.msra.mxu0 %v882
    %1102 = vmatprep.subr.mxu0 %v885
    %1103 = vmatpush1.msra.mxu0 %v884
    %1104 = vmatprep.subr.mxu0 %v887
    %1105 = vmatpush1.msra.mxu0 %v886
    %1106 = vmatprep.subr.mxu0 %v889
    %1107 = vmatpush1.msra.mxu0 %v888
    %1108 = vmatprep.subr.mxu0 %v891
    %1109 = vmatpush1.msra.mxu0 %v890
    %1110 = vmatprep.subr.mxu0 %v893
    %1111 = vmatpush1.msra.mxu0 %v892
    %1112 = vmatprep.subr.mxu0 %v895
    %1113 = vmatpush1.msra.mxu0 %v894
    %1114 = vmatprep.subr.mxu0 %v897
    %1115 = vmatpush1.msra.mxu0 %v896
    %1116 = vmatprep.subr.mxu0 %v899
    %1117 = vmatpush1.msra.mxu0 %v898
    %1118 = vmatprep.subr.mxu0 %v901
    %1119 = vmatpush1.msra.mxu0 %v900
    %1120 = vmatprep.subr.mxu0 %v903
    %1121 = vmatpush1.msra.mxu0 %v902
    %1122 = vmatprep.subr.mxu0 %v905
    %1123 = vmatpush1.msra.mxu0 %v904
    %1124 = vmatprep.subr.mxu0 %v907
    %1125 = vmatpush1.msra.mxu0 %v906
    %1126 = vmatprep.subr.mxu0 %v909
    %1127 = vmatpush1.msra.mxu0 %v908
    %1128 = vmatprep.subr.mxu0 %v911
    %1129 = vmatpush1.msra.mxu0 %v910
    %1130 = vmatprep.subr.mxu0 %v913
    %1131 = vmatpush1.msra.mxu0 %v912
    %1132 = vmatprep.mubr.f32.mxu0 %v992
    %1133 = vmatmul.mubr.f32.gmra.mrb[0].mxu0 %v985
    %v1134 = vpop.f32.mrb[0].mxu0
    %v1135 = vadd.f32 %v1064, %v1134
    %v1136 = vpop.f32.mrb[0].mxu0
    %v1137 = vadd.f32 %v1066, %v1136
    %1138 = vdwg.mxu0
    %vm1139 = vcmp.gt.f32.partialorder %v1135, 0.0
    %vm1140 = vcmp.gt.f32.partialorder %v1137, 0.0
    %v1141 = vmul.f32 %v1135, 0.2
    %v1142 = vmul.f32 %v1137, 0.2
    %v1143 = vsel %vm1139, %v1135, %v1141
    %v1144 = vsel %vm1140, %v1137, %v1142
    %v1145 = vld [vmem:[#allocation7] sm:$0xff]
    %v1146 = vld [vmem:[#allocation7 + $0x8] sm:$0xff]
    %v1147 = vld [vmem:[#allocation7 + $0x10] sm:$0xff]
    %v1148 = vld [vmem:[#allocation7 + $0x18] sm:$0xff]
    %v1149 = vld [vmem:[#allocation7 + $0x20] sm:$0xff]
    %v1150 = vld [vmem:[#allocation7 + $0x28] sm:$0xff]
    %v1151 = vld [vmem:[#allocation7 + $0x30] sm:$0xff]
    %v1152 = vld [vmem:[#allocation7 + $0x38] sm:$0xff]
    %v1153 = vld [vmem:[#allocation7 + $0x40] sm:$0xff]
    %v1154 = vld [vmem:[#allocation7 + $0x48] sm:$0xff]
    %v1155 = vld [vmem:[#allocation7 + $0x50] sm:$0xff]
    %v1156 = vld [vmem:[#allocation7 + $0x58] sm:$0xff]
    %v1157 = vld [vmem:[#allocation7 + $0x60] sm:$0xff]
    %v1158 = vld [vmem:[#allocation7 + $0x68] sm:$0xff]
    %v1159 = vld [vmem:[#allocation7 + $0x70] sm:$0xff]
    %v1160 = vld [vmem:[#allocation7 + $0x78] sm:$0xff]
    %v1161 = vld [vmem:[#allocation7 + $0x80] sm:$0xff]
    %v1162 = vld [vmem:[#allocation7 + $0x88] sm:$0xff]
    %v1163 = vld [vmem:[#allocation7 + $0x90] sm:$0xff]
    %v1164 = vld [vmem:[#allocation7 + $0x98] sm:$0xff]
    %v1165 = vld [vmem:[#allocation7 + $0xa0] sm:$0xff]
    %v1166 = vld [vmem:[#allocation7 + $0xa8] sm:$0xff]
    %v1167 = vld [vmem:[#allocation7 + $0xb0] sm:$0xff]
    %v1168 = vld [vmem:[#allocation7 + $0xb8] sm:$0xff]
    %v1169 = vld [vmem:[#allocation7 + $0xc0] sm:$0xff]
    %v1170 = vld [vmem:[#allocation7 + $0xc8] sm:$0xff]
    %v1171 = vld [vmem:[#allocation7 + $0xd0] sm:$0xff]
    %v1172 = vld [vmem:[#allocation7 + $0xd8] sm:$0xff]
    %v1173 = vld [vmem:[#allocation7 + $0xe0] sm:$0xff]
    %v1174 = vld [vmem:[#allocation7 + $0xe8] sm:$0xff]
    %v1175 = vld [vmem:[#allocation7 + $0xf0] sm:$0xff]
    %v1176 = vld [vmem:[#allocation7 + $0xf8] sm:$0xff]
    %v1177 = vld [vmem:[%s4] sm:$0x1]
    %v1179 = vlaneseq
    %v1180 = vshrl.u32 %v1179, 7
    %v1181 = vsub.s32 0, %v1180
    %v1182 = vrot.slane %v1177, %v1181
    %1184 = vmatprep.subr.mxu0 0.0
    %1185 = vmatpush1.msra.mxu0 %v1145
    %1186 = vmatprep.subr.mxu0 0.0
    %1187 = vmatpush1.msra.mxu0 %v1146
    %1188 = vmatprep.subr.mxu0 0.0
    %1189 = vmatpush1.msra.mxu0 %v1147
    %1190 = vmatprep.subr.mxu0 0.0
    %1191 = vmatpush1.msra.mxu0 %v1148
    %1192 = vmatprep.subr.mxu0 0.0
    %1193 = vmatpush1.msra.mxu0 %v1149
    %1194 = vmatprep.subr.mxu0 0.0
    %1195 = vmatpush1.msra.mxu0 %v1150
    %1196 = vmatprep.subr.mxu0 0.0
    %1197 = vmatpush1.msra.mxu0 %v1151
    %1198 = vmatprep.subr.mxu0 0.0
    %1199 = vmatpush1.msra.mxu0 %v1152
    %1200 = vmatprep.subr.mxu0 0.0
    %1201 = vmatpush1.msra.mxu0 %v1153
    %1202 = vmatprep.subr.mxu0 0.0
    %1203 = vmatpush1.msra.mxu0 %v1154
    %1204 = vmatprep.subr.mxu0 0.0
    %1205 = vmatpush1.msra.mxu0 %v1155
    %1206 = vmatprep.subr.mxu0 0.0
    %1207 = vmatpush1.msra.mxu0 %v1156
    %1208 = vmatprep.subr.mxu0 0.0
    %1209 = vmatpush1.msra.mxu0 %v1157
    %1210 = vmatprep.subr.mxu0 0.0
    %1211 = vmatpush1.msra.mxu0 %v1158
    %1212 = vmatprep.subr.mxu0 0.0
    %1213 = vmatpush1.msra.mxu0 %v1159
    %1214 = vmatprep.subr.mxu0 0.0
    %1215 = vmatpush1.msra.mxu0 %v1160
    %1216 = vmatprep.subr.mxu0 0.0
    %1217 = vmatpush1.msra.mxu0 %v1161
    %1218 = vmatprep.subr.mxu0 0.0
    %1219 = vmatpush1.msra.mxu0 %v1162
    %1220 = vmatprep.subr.mxu0 0.0
    %1221 = vmatpush1.msra.mxu0 %v1163
    %1222 = vmatprep.subr.mxu0 0.0
    %1223 = vmatpush1.msra.mxu0 %v1164
    %1224 = vmatprep.subr.mxu0 0.0
    %1225 = vmatpush1.msra.mxu0 %v1165
    %1226 = vmatprep.subr.mxu0 0.0
    %1227 = vmatpush1.msra.mxu0 %v1166
    %1228 = vmatprep.subr.mxu0 0.0
    %1229 = vmatpush1.msra.mxu0 %v1167
    %1230 = vmatprep.subr.mxu0 0.0
    %1231 = vmatpush1.msra.mxu0 %v1168
    %1232 = vmatprep.subr.mxu0 0.0
    %1233 = vmatpush1.msra.mxu0 %v1169
    %1234 = vmatprep.subr.mxu0 0.0
    %1235 = vmatpush1.msra.mxu0 %v1170
    %1236 = vmatprep.subr.mxu0 0.0
    %1237 = vmatpush1.msra.mxu0 %v1171
    %1238 = vmatprep.subr.mxu0 0.0
    %1239 = vmatpush1.msra.mxu0 %v1172
    %1240 = vmatprep.subr.mxu0 0.0
    %1241 = vmatpush1.msra.mxu0 %v1173
    %1242 = vmatprep.subr.mxu0 0.0
    %1243 = vmatpush1.msra.mxu0 %v1174
    %1244 = vmatprep.subr.mxu0 0.0
    %1245 = vmatpush1.msra.mxu0 %v1175
    %1246 = vmatprep.subr.mxu0 0.0
    %1247 = vmatpush1.msra.mxu0 %v1176
    %1248 = vmatprep.mubr.f32.mxu0 %v1144
    %1249 = vmatmul.mubr.f32.gmra.mrb[0].mxu0 %v1143
    %v1250 = vpop.f32.mrb[0].mxu0
    %v1251 = vadd.f32 %v1182, %v1250
    %v1252 = vpop.f32.mrb[0].mxu0
    %1253 = vdwg.mxu0
    %vm1254 = vcmp.gt.f32.partialorder %v1251, 0.0
    %v1255 = vmul.f32 %v1251, 0.2
    %v1256 = vsel %vm1254, %v1251, %v1255
    %v1257 = vld [vmem:[#allocation8] sm:$0xff]
    %v1258 = vld [vmem:[#allocation8 + $0x8] sm:$0xff]
    %v1259 = vld [vmem:[#allocation8 + $0x10] sm:$0xff]
    %v1260 = vld [vmem:[#allocation8 + $0x18] sm:$0xff]
    %v1261 = vld [vmem:[#allocation8 + $0x20] sm:$0xff]
    %v1262 = vld [vmem:[#allocation8 + $0x28] sm:$0xff]
    %v1263 = vld [vmem:[#allocation8 + $0x30] sm:$0xff]
    %v1264 = vld [vmem:[#allocation8 + $0x38] sm:$0xff]
    %v1265 = vld [vmem:[#allocation8 + $0x40] sm:$0xff]
    %v1266 = vld [vmem:[#allocation8 + $0x48] sm:$0xff]
    %v1267 = vld [vmem:[#allocation8 + $0x50] sm:$0xff]
    %v1268 = vld [vmem:[#allocation8 + $0x58] sm:$0xff]
    %v1269 = vld [vmem:[#allocation8 + $0x60] sm:$0xff]
    %v1270 = vld [vmem:[#allocation8 + $0x68] sm:$0xff]
    %v1271 = vld [vmem:[#allocation8 + $0x70] sm:$0xff]
    %v1272 = vld [vmem:[#allocation8 + $0x78] sm:$0xff]
    %v1273 = vld [vmem:[%s6] sm:$0x1]
    %v1275 = vlaneseq
    %v1276 = vshrl.u32 %v1275, 7
    %v1277 = vsub.s32 0, %v1276
    %v1278 = vrot.slane %v1273, %v1277
    %1280 = vmatprep.subr.mxu0 0.0
    %1281 = vmatpush1.msra.mxu0 %v1257
    %1282 = vmatprep.subr.mxu0 0.0
    %1283 = vmatpush1.msra.mxu0 %v1258
    %1284 = vmatprep.subr.mxu0 0.0
    %1285 = vmatpush1.msra.mxu0 %v1259
    %1286 = vmatprep.subr.mxu0 0.0
    %1287 = vmatpush1.msra.mxu0 %v1260
    %1288 = vmatprep.subr.mxu0 0.0
    %1289 = vmatpush1.msra.mxu0 %v1261
    %1290 = vmatprep.subr.mxu0 0.0
    %1291 = vmatpush1.msra.mxu0 %v1262
    %1292 = vmatprep.subr.mxu0 0.0
    %1293 = vmatpush1.msra.mxu0 %v1263
    %1294 = vmatprep.subr.mxu0 0.0
    %1295 = vmatpush1.msra.mxu0 %v1264
    %1296 = vmatprep.subr.mxu0 0.0
    %1297 = vmatpush1.msra.mxu0 %v1265
    %1298 = vmatprep.subr.mxu0 0.0
    %1299 = vmatpush1.msra.mxu0 %v1266
    %1300 = vmatprep.subr.mxu0 0.0
    %1301 = vmatpush1.msra.mxu0 %v1267
    %1302 = vmatprep.subr.mxu0 0.0
    %1303 = vmatpush1.msra.mxu0 %v1268
    %1304 = vmatprep.subr.mxu0 0.0
    %1305 = vmatpush1.msra.mxu0 %v1269
    %1306 = vmatprep.subr.mxu0 0.0
    %1307 = vmatpush1.msra.mxu0 %v1270
    %1308 = vmatprep.subr.mxu0 0.0
    %1309 = vmatpush1.msra.mxu0 %v1271
    %1310 = vmatprep.subr.mxu0 0.0
    %1311 = vmatpush1.msra.mxu0 %v1272
    %1312 = vmatprep.subr.mxu0 0.0
    %1313 = vmatpush1.msra.mxu0 0.0
    %1314 = vmatprep.subr.mxu0 0.0
    %1315 = vmatpush1.msra.mxu0 0.0
    %1316 = vmatprep.subr.mxu0 0.0
    %1317 = vmatpush1.msra.mxu0 0.0
    %1318 = vmatprep.subr.mxu0 0.0
    %1319 = vmatpush1.msra.mxu0 0.0
    %1320 = vmatprep.subr.mxu0 0.0
    %1321 = vmatpush1.msra.mxu0 0.0
    %1322 = vmatprep.subr.mxu0 0.0
    %1323 = vmatpush1.msra.mxu0 0.0
    %1324 = vmatprep.subr.mxu0 0.0
    %1325 = vmatpush1.msra.mxu0 0.0
    %1326 = vmatprep.subr.mxu0 0.0
    %1327 = vmatpush1.msra.mxu0 0.0
    %1328 = vmatprep.subr.mxu0 0.0
    %1329 = vmatpush1.msra.mxu0 0.0
    %1330 = vmatprep.subr.mxu0 0.0
    %1331 = vmatpush1.msra.mxu0 0.0
    %1332 = vmatprep.subr.mxu0 0.0
    %1333 = vmatpush1.msra.mxu0 0.0
    %1334 = vmatprep.subr.mxu0 0.0
    %1335 = vmatpush1.msra.mxu0 0.0
    %1336 = vmatprep.subr.mxu0 0.0
    %1337 = vmatpush1.msra.mxu0 0.0
    %1338 = vmatprep.subr.mxu0 0.0
    %1339 = vmatpush1.msra.mxu0 0.0
    %1340 = vmatprep.subr.mxu0 0.0
    %1341 = vmatpush1.msra.mxu0 0.0
    %1342 = vmatprep.subr.mxu0 0.0
    %1343 = vmatpush1.msra.mxu0 0.0
    %1344 = vmatprep.mubr.f32.mxu0 0.0
    %1345 = vmatmul.mubr.f32.gmra.mrb[0].mxu0 %v1256
    %v1346 = vpop.f32.mrb[0].mxu0
    %v1347 = vadd.f32 %v1278, %v1346
    %v1348 = vpop.f32.mrb[0].mxu0
    %1349 = vdwg.mxu0
    %1350 = vst [vmem:[#allocation10] sm:$0xff] %v1347
    // Predicated region
    $region46: #{tpu_custom_call.1} parent=1 // pred_check
      _
    $region47: #{tpu_custom_call.1} parent=1 // pred_check_branch
      %1352 = sbr.rel (0) target = $region49
    $region48: #{tpu_custom_call.1} parent=1 // pred_region
      %s1354 = ssub.s32 128, 128
      %1355 = vsyncadd [#allocation4], %s1354
      %s1357 = sshll.u32 [#allocation10], 4
      %s1358 = int_to_ptr.vmem [resolvable:$true] %s1357
      %1360 = dma.vmem_to_hbm [thread:$0]  %s1358, 128, %s7, [#allocation4]
    $region49: #{tpu_custom_call.1} parent=1 // pred_fallthru
      _
    // Predicated region
    $region50: #{tpu_custom_call.1} parent=1 // pred_check
      _
    $region51: #{tpu_custom_call.1} parent=1 // pred_check_branch
      %1362 = sbr.rel (0) target = $region53
    $region52: #{tpu_custom_call.1} parent=1 // pred_region
      %1363 = dma.done [#allocation4], 128
    $region53: #{tpu_custom_call.1} parent=1 // pred_fallthru
      _
    %1364 = vsyncpa [#allocation3], 1
    %1365 = vsyncpa [#allocation6], 1
    %1366 = vsyncpa [#allocation9], 1
    %1367 = vsyncpa [#allocation4], 1

</llo_original>
